<compile_context>
chip_gen: v7x
topology: tpu7x:2x2x1
jax: 0.10.0
libtpu: 0.0.40
codegen_flags: <defaults>
</compile_context>

<pallas_src>
import math
import jax
import jax.numpy as jnp
from jax.experimental import pallas as pl
from jax.experimental.pallas import tpu as pltpu

# ---------------- config ----------------
VOCAB = 64
VOCAB_PAD = 128          # lane-dense decoder output width
EMB = 16
HID = 32
HEADS = 4
HEAD_DIM = HID // HEADS
INTER = 64
LAYERS = 2               # ALBERT cross-layer weight sharing: one set applied LAYERS times
MAX_POS = 16
LN_EPS = 1e-12
MASK_NEG = -1e9
SCALE = 1.0 / math.sqrt(HEAD_DIM)
LANE = 128

# ---- matrix slab layout (rows x 384, bf16); all row offsets are multiples of 16 (bf16 tile) ----
SLAB_COLS = 3 * LANE                       # 384
R_MAP = 0                                  # (EMB, HID)
R_QKV = R_MAP + EMB                        # 16  : (HID, 3*128)  q|k|v at 128-lane boundaries
R_AO = R_QKV + HID                         # 48  : (128, HID)    attn-out, row-padded
R_FFN = R_AO + LANE                        # 176 : (HID, INTER)
R_FFO = R_FFN + HID                        # 208 : (INTER, HID)
R_MLM = R_FFO + INTER                      # 272 : (HID, EMB)
R_DEC = R_MLM + HID                        # 304 : (EMB, VOCAB_PAD)
SLAB_ROWS = R_DEC + EMB                    # 320

# ---- vector slab layout (16 rows x 384, f32): one row per bias / LN parameter ----
V_EMB_LN_G, V_EMB_LN_B = 0, 1
V_MAP_B = 2
V_QKV_B = 3                                # q|k|v biases at the same 128-lane offsets
V_AO_B = 4
V_ATTN_LN_G, V_ATTN_LN_B = 5, 6
V_FFN_B = 7
V_FFO_B = 8
V_LYR_LN_G, V_LYR_LN_B = 9, 10
V_MLM_B = 11
V_MLM_LN_G, V_MLM_LN_B = 12, 13
V_DEC_B = 14
VSLAB_ROWS = 16


# ---------------- in-kernel helpers ----------------
def _gelu_new(x):
    # HF "gelu_new" (tanh approximation) used by ALBERT
    return 0.5 * x * (1.0 + jnp.tanh(
        math.sqrt(2.0 / math.pi) * (x + 0.044715 * x * x * x)))


def _layernorm(x, g, b, eps=LN_EPS):
    mu = jnp.mean(x, axis=-1, keepdims=True)
    var = jnp.mean((x - mu) * (x - mu), axis=-1, keepdims=True)
    return (x - mu) * jax.lax.rsqrt(var + eps) * g + b


# ---------------- fused forward kernel (one grid step == one batch element) ----------------
def _build_albert_kernel(S):
    HS = HEADS * S

    def kernel(emb_ref, mask_ref, w_ref, v_ref, o_ref):
        def vrow(r, w):                       # (1, w) f32 row of the vector slab
            return v_ref[r:r + 1, 0:w]

        def wmat(r0, rows, cols):             # bf16 weight block
            return w_ref[r0:r0 + rows, 0:cols]

        def mm(x, w):                         # bf16 MXU operands, f32 accumulation
            return jnp.dot(x.astype(jnp.bfloat16), w.astype(jnp.bfloat16),
                           preferred_element_type=jnp.float32)

        # --- embeddings LN + embedding->hidden mapping ---
        x = _layernorm(emb_ref[...], vrow(V_EMB_LN_G, EMB), vrow(V_EMB_LN_B, EMB))
        hidden = mm(x, wmat(R_MAP, EMB, HID)) + vrow(V_MAP_B, HID)          # (S, HID)

        # --- shared encoder-layer weights, loaded once (stay resident) ---
        w_qkv = wmat(R_QKV, HID, 3 * LANE)
        w_ao = wmat(R_AO, LANE, HID)
        w_ffn = wmat(R_FFN, HID, INTER)
        w_ffo = wmat(R_FFO, INTER, HID)

        # hoisted broadcasts (JAX does not CSE broadcast_in_dim across the unrolled layers)
        b_qkv = jnp.broadcast_to(vrow(V_QKV_B, 3 * LANE), (S, 3 * LANE))
        b_ao = jnp.broadcast_to(vrow(V_AO_B, HID), (S, HID))
        g_attn = jnp.broadcast_to(vrow(V_ATTN_LN_G, HID), (S, HID))
        bt_attn = jnp.broadcast_to(vrow(V_ATTN_LN_B, HID), (S, HID))
        b_ffn = jnp.broadcast_to(vrow(V_FFN_B, INTER), (S, INTER))
        b_ffo = jnp.broadcast_to(vrow(V_FFO_B, HID), (S, HID))
        g_lyr = jnp.broadcast_to(vrow(V_LYR_LN_G, HID), (S, HID))
        bt_lyr = jnp.broadcast_to(vrow(V_LYR_LN_B, HID), (S, HID))

        # --- additive key-padding bias built in-kernel from the (1, S) validity row ---
        key_valid = mask_ref[...].reshape(1, S)
        key_bias = jnp.broadcast_to(jnp.where(key_valid > 0.0, 0.0, MASK_NEG), (HS, S))

        # --- per-head column selectors over the 128-lane padded hidden block ---
        lane = jax.lax.broadcasted_iota(jnp.int32, (HEADS, 1, LANE), 2)
        head = jax.lax.broadcasted_iota(jnp.int32, (HEADS, 1, LANE), 0)
        hmask = jnp.where((lane >= head * HEAD_DIM) & (lane < (head + 1) * HEAD_DIM),
                          1.0, 0.0)                                        # (HEADS,1,128)

        def layer(_, h_in):
            # fused QKV: one matmul; 128-aligned slices are free views.
            # 1/sqrt(head_dim) is pre-folded into the q weight/bias at init.
            qkv = mm(h_in, w_qkv) + b_qkv                                  # (S, 384)
            q = qkv[:, 0:LANE]
            k = qkv[:, LANE:2 * LANE]
            v = qkv[:, 2 * LANE:3 * LANE]

            # head-stacked attention: one QK^T, one softmax, one PV for all heads
            q_stack = (q[None, :, :] * hmask).reshape(HS, LANE)            # q-mask on contraction dim
            s = jax.lax.dot_general(
                q_stack.astype(jnp.bfloat16), k.astype(jnp.bfloat16),
                (((1,), (1,)), ((), ())),
                preferred_element_type=jnp.float32)                        # (HS, S)
            s = s + key_bias
            s = s - jnp.max(s, axis=-1, keepdims=True)   # keep: fully-masked rows stay finite
            p = jnp.exp(s)
            p = p * pl.reciprocal(jnp.sum(p, axis=-1, keepdims=True), approx=True)
            pv = mm(p, v)                                                  # (HS, 128)
            ctx = jnp.sum(pv.reshape(HEADS, S, LANE) * hmask, axis=0)      # (S, 128)

            proj = mm(ctx, w_ao) + b_ao                                    # (S, HID)
            attn_out = _layernorm(h_in + proj, g_attn, bt_attn)            # fused residual + LN
            f = _gelu_new(mm(attn_out, w_ffn) + b_ffn)
            f = mm(f, w_ffo) + b_ffo
            return _layernorm(f + attn_out, g_lyr, bt_lyr)                 # fused residual + LN

        hidden = jax.lax.fori_loop(0, LAYERS, layer, hidden, unroll=True)

        # --- MLM head ---
        h = _gelu_new(mm(hidden, wmat(R_MLM, HID, EMB)) + vrow(V_MLM_B, EMB))
        h = _layernorm(h, vrow(V_MLM_LN_G, EMB), vrow(V_MLM_LN_B, EMB))
        o_ref[...] = mm(h, wmat(R_DEC, EMB, VOCAB_PAD)) + vrow(V_DEC_B, VOCAB_PAD)

    return kernel


# ---------------- parameter init + one-time packing (synthetic, deterministic) ----------------
def init_params(key):
    def nrm(k, shape, scale=0.02):
        return scale * jax.random.normal(k, shape, dtype=jnp.float32)

    ks = iter(jax.random.split(key, 16))
    word_emb = nrm(next(ks), (VOCAB, EMB))
    pos_emb = nrm(next(ks), (MAX_POS, EMB))
    tok_emb = nrm(next(ks), (2, EMB))
    map_w = nrm(next(ks), (EMB, HID))
    q_w = nrm(next(ks), (HID, HID))
    k_w = nrm(next(ks), (HID, HID))
    v_w = nrm(next(ks), (HID, HID))
    ao_w = nrm(next(ks), (HID, HID))
    ffn_w = nrm(next(ks), (HID, INTER))
    ffo_w = nrm(next(ks), (INTER, HID))
    mlm_w = nrm(next(ks), (HID, EMB))
    dec_w = word_emb.T                       # ALBERT ties the MLM decoder to the word embeddings

    # matrix slab (bf16): one DMA for all 2-D weights
    w = jnp.zeros((SLAB_ROWS, SLAB_COLS), jnp.float32)
    w = w.at[R_MAP:R_MAP + EMB, 0:HID].set(map_w)
    w = w.at[R_QKV:R_QKV + HID, 0:HID].set(q_w * SCALE)          # fold 1/sqrt(head_dim)
    w = w.at[R_QKV:R_QKV + HID, LANE:LANE + HID].set(k_w)
    w = w.at[R_QKV:R_QKV + HID, 2 * LANE:2 * LANE + HID].set(v_w)
    w = w.at[R_AO:R_AO + HID, 0:HID].set(ao_w)                   # rows HID..127 stay zero
    w = w.at[R_FFN:R_FFN + HID, 0:INTER].set(ffn_w)
    w = w.at[R_FFO:R_FFO + INTER, 0:HID].set(ffo_w)
    w = w.at[R_MLM:R_MLM + HID, 0:EMB].set(mlm_w)
    w = w.at[R_DEC:R_DEC + EMB, 0:VOCAB].set(dec_w)              # cols VOCAB..127 stay zero

    # vector slab (f32): one DMA for all biases / LN params (biases & LN betas are zero-init)
    v = jnp.zeros((VSLAB_ROWS, SLAB_COLS), jnp.float32)
    v = v.at[V_EMB_LN_G, 0:EMB].set(1.0)
    v = v.at[V_ATTN_LN_G, 0:HID].set(1.0)
    v = v.at[V_LYR_LN_G, 0:HID].set(1.0)
    v = v.at[V_MLM_LN_G, 0:EMB].set(1.0)

    return {"word_emb": word_emb, "pos_emb": pos_emb, "tok_emb": tok_emb,
            "w_slab": w.astype(jnp.bfloat16), "v_slab": v}


# ---------------- forward pass (mirrors AlbertForMaskedLM.forward -> logits) ----------------
def albert_maskfill_forward(params, input_ids, attention_mask):
    B, S = input_ids.shape
    assert S % 8 == 0 and S <= MAX_POS
    BS = B * S
    p = params

    # TODO(synk): embedding gather kept in plain JAX (jnp.take); not on the matmul hot path.
    inputs_embeds = jnp.take(p["word_emb"], input_ids, axis=0)             # (B, S, E)
    emb = (inputs_embeds
           + p["pos_emb"][:S][None, :, :]
           + p["tok_emb"][0][None, None, :])                               # token_type_ids = 0
    emb2d = emb.reshape(BS, EMB).astype(jnp.float32)
    mask3d = attention_mask.reshape(B, 1, S).astype(jnp.float32)

    kernel = _build_albert_kernel(S)
    logits_pad = pl.pallas_call(
        kernel,
        out_shape=jax.ShapeDtypeStruct((BS, VOCAB_PAD), jnp.float32),
        grid=(B,),
        in_specs=[
            pl.BlockSpec((S, EMB), lambda b: (b, 0)),                      # per-batch activations
            pl.BlockSpec((1, 1, S), lambda b: (b, 0, 0)),                  # per-batch key validity
            pl.BlockSpec((SLAB_ROWS, SLAB_COLS), lambda b: (0, 0)),        # weight slab (resident)
            pl.BlockSpec((VSLAB_ROWS, SLAB_COLS), lambda b: (0, 0)),       # bias/LN slab (resident)
        ],
        out_specs=pl.BlockSpec((S, VOCAB_PAD), lambda b: (b, 0)),
        compiler_params=pltpu.CompilerParams(
            dimension_semantics=("parallel",)),                            # v7x: 2nd TC gets batch 1
    )(emb2d, mask3d, p["w_slab"], p["v_slab"])

    return logits_pad[:, :VOCAB].reshape(B, S, VOCAB)


# ---------------- main ----------------
if __name__ == "__main__":
    key = jax.random.PRNGKey(0)
    kp, ki = jax.random.split(key)

    params = init_params(kp)

    B, S = 2, 8
    input_ids = jax.random.randint(ki, (B, S), 0, VOCAB, dtype=jnp.int32)
    attention_mask = jnp.ones((B, S), dtype=jnp.int32)

    fwd = jax.jit(albert_maskfill_forward)
    logits = jax.block_until_ready(fwd(params, input_ids, attention_mask))

    assert logits.shape == (B, S, VOCAB)
    assert bool(jnp.all(jnp.isfinite(logits)))
    print("KERNEL_OK")
</pallas_src>

<mosaic_0001>
module attributes {stable_mosaic.version = 11 : i64} {
  func.func @kernel(%arg0: i32, %arg1: memref<8x16xf32, #tpu.memory_space<vmem>>, %arg2: memref<1x1x8xf32, #tpu.memory_space<vmem>>, %arg3: memref<320x384xbf16, #tpu.memory_space<vmem>>, %arg4: memref<16x384xf32, #tpu.memory_space<vmem>>, %arg5: memref<8x128xf32, #tpu.memory_space<vmem>>) attributes {dimension_semantics = [#tpu.dimension_semantics<parallel>], iteration_bounds = array<i64: 2>, scalar_prefetch = 0 : i64, scratch_operands = 0 : i64, tpu.core_type = #tpu.core_type<tc>, window_params = [{transform_indices = @transform_0, window_bounds = array<i64: 8, 16>}, {transform_indices = @transform_1, window_bounds = array<i64: 1, 1, 8>}, {pipeline_mode = #tpu.pipeline_mode<synchronous>, transform_indices = @transform_2, window_bounds = array<i64: 320, 384>}, {pipeline_mode = #tpu.pipeline_mode<synchronous>, transform_indices = @transform_3, window_bounds = array<i64: 16, 384>}, {transform_indices = @transform_4, window_bounds = array<i64: 8, 128>}]} {
    %c0 = arith.constant 0 : index
    %c0_0 = arith.constant 0 : index
    %0 = vector.load %arg1[%c0, %c0_0] : memref<8x16xf32, #tpu.memory_space<vmem>>, vector<8x16xf32>
    %c0_1 = arith.constant 0 : index
    %c0_2 = arith.constant 0 : index
    %1 = vector.load %arg4[%c0_1, %c0_2] : memref<16x384xf32, #tpu.memory_space<vmem>>, vector<1x16xf32>
    %c1 = arith.constant 1 : index
    %c0_3 = arith.constant 0 : index
    %2 = vector.load %arg4[%c1, %c0_3] : memref<16x384xf32, #tpu.memory_space<vmem>>, vector<1x16xf32>
    %cst = arith.constant dense<0.000000e+00> : vector<8xf32>
    %3 = vector.multi_reduction <add>, %0, %cst [1] : vector<8x16xf32> to vector<8xf32>
    %4 = vector.shape_cast %3 : vector<8xf32> to vector<8x1xf32>
    %cst_4 = arith.constant 1.600000e+01 : f32
    %5 = vector.broadcast %cst_4 : f32 to vector<8x1xf32>
    %6 = arith.divf %4, %5 : vector<8x1xf32>
    %7 = vector.broadcast %6 : vector<8x1xf32> to vector<8x16xf32>
    %8 = arith.subf %0, %7 : vector<8x16xf32>
    %9 = vector.broadcast %6 : vector<8x1xf32> to vector<8x16xf32>
    %10 = arith.subf %0, %9 : vector<8x16xf32>
    %11 = arith.mulf %8, %10 : vector<8x16xf32>
    %cst_5 = arith.constant dense<0.000000e+00> : vector<8xf32>
    %12 = vector.multi_reduction <add>, %11, %cst_5 [1] : vector<8x16xf32> to vector<8xf32>
    %13 = vector.shape_cast %12 : vector<8xf32> to vector<8x1xf32>
    %cst_6 = arith.constant 1.600000e+01 : f32
    %14 = vector.broadcast %cst_6 : f32 to vector<8x1xf32>
    %15 = arith.divf %13, %14 : vector<8x1xf32>
    %16 = vector.broadcast %6 : vector<8x1xf32> to vector<8x16xf32>
    %17 = arith.subf %0, %16 : vector<8x16xf32>
    %cst_7 = arith.constant 9.99999996E-13 : f32
    %18 = vector.broadcast %cst_7 : f32 to vector<8x1xf32>
    %19 = arith.addf %15, %18 : vector<8x1xf32>
    %20 = math.rsqrt %19 : vector<8x1xf32>
    %21 = vector.broadcast %20 : vector<8x1xf32> to vector<8x16xf32>
    %22 = arith.mulf %17, %21 : vector<8x16xf32>
    %23 = vector.broadcast %1 : vector<1x16xf32> to vector<8x16xf32>
    %24 = arith.mulf %22, %23 : vector<8x16xf32>
    %25 = vector.broadcast %2 : vector<1x16xf32> to vector<8x16xf32>
    %26 = arith.addf %24, %25 : vector<8x16xf32>
    %c0_8 = arith.constant 0 : index
    %c0_9 = arith.constant 0 : index
    %27 = vector.load %arg3[%c0_8, %c0_9] : memref<320x384xbf16, #tpu.memory_space<vmem>>, vector<16x32xbf16>
    %28 = arith.truncf %26 : vector<8x16xf32> to vector<8x16xbf16>
    %cst_10 = arith.constant dense<0.000000e+00> : vector<8x32xf32>
    %29 = tpu.matmul %28, %27, %cst_10 {dimension_numbers = #tpu.dot_dimension_numbers<[1], [0], [0], [1], [0, 0, 1, 1], [], []>} : vector<8x16xbf16>, vector<16x32xbf16>, vector<8x32xf32> -> vector<8x32xf32>
    %c2 = arith.constant 2 : index
    %c0_11 = arith.constant 0 : index
    %30 = vector.load %arg4[%c2, %c0_11] : memref<16x384xf32, #tpu.memory_space<vmem>>, vector<1x32xf32>
    %31 = vector.broadcast %30 : vector<1x32xf32> to vector<8x32xf32>
    %32 = arith.addf %29, %31 : vector<8x32xf32>
    %c16 = arith.constant 16 : index
    %c0_12 = arith.constant 0 : index
    %33 = vector.load %arg3[%c16, %c0_12] : memref<320x384xbf16, #tpu.memory_space<vmem>>, vector<32x384xbf16>
    %c48 = arith.constant 48 : index
    %c0_13 = arith.constant 0 : index
    %34 = vector.load %arg3[%c48, %c0_13] : memref<320x384xbf16, #tpu.memory_space<vmem>>, vector<128x32xbf16>
    %c176 = arith.constant 176 : index
    %c0_14 = arith.constant 0 : index
    %35 = vector.load %arg3[%c176, %c0_14] : memref<320x384xbf16, #tpu.memory_space<vmem>>, vector<32x64xbf16>
    %c208 = arith.constant 208 : index
    %c0_15 = arith.constant 0 : index
    %36 = vector.load %arg3[%c208, %c0_15] : memref<320x384xbf16, #tpu.memory_space<vmem>>, vector<64x32xbf16>
    %c3 = arith.constant 3 : index
    %c0_16 = arith.constant 0 : index
    %37 = vector.load %arg4[%c3, %c0_16] : memref<16x384xf32, #tpu.memory_space<vmem>>, vector<1x384xf32>
    %38 = vector.shape_cast %37 : vector<1x384xf32> to vector<1x384xf32>
    %39 = vector.broadcast %38 : vector<1x384xf32> to vector<8x384xf32>
    %c4 = arith.constant 4 : index
    %c0_17 = arith.constant 0 : index
    %40 = vector.load %arg4[%c4, %c0_17] : memref<16x384xf32, #tpu.memory_space<vmem>>, vector<1x32xf32>
    %41 = vector.shape_cast %40 : vector<1x32xf32> to vector<1x32xf32>
    %42 = vector.broadcast %41 : vector<1x32xf32> to vector<8x32xf32>
    %c5 = arith.constant 5 : index
    %c0_18 = arith.constant 0 : index
    %43 = vector.load %arg4[%c5, %c0_18] : memref<16x384xf32, #tpu.memory_space<vmem>>, vector<1x32xf32>
    %44 = vector.shape_cast %43 : vector<1x32xf32> to vector<1x32xf32>
    %45 = vector.broadcast %44 : vector<1x32xf32> to vector<8x32xf32>
    %c6 = arith.constant 6 : index
    %c0_19 = arith.constant 0 : index
    %46 = vector.load %arg4[%c6, %c0_19] : memref<16x384xf32, #tpu.memory_space<vmem>>, vector<1x32xf32>
    %47 = vector.shape_cast %46 : vector<1x32xf32> to vector<1x32xf32>
    %48 = vector.broadcast %47 : vector<1x32xf32> to vector<8x32xf32>
    %c7 = arith.constant 7 : index
    %c0_20 = arith.constant 0 : index
    %49 = vector.load %arg4[%c7, %c0_20] : memref<16x384xf32, #tpu.memory_space<vmem>>, vector<1x64xf32>
    %50 = vector.shape_cast %49 : vector<1x64xf32> to vector<1x64xf32>
    %51 = vector.broadcast %50 : vector<1x64xf32> to vector<8x64xf32>
    %c8 = arith.constant 8 : index
    %c0_21 = arith.constant 0 : index
    %52 = vector.load %arg4[%c8, %c0_21] : memref<16x384xf32, #tpu.memory_space<vmem>>, vector<1x32xf32>
    %53 = vector.shape_cast %52 : vector<1x32xf32> to vector<1x32xf32>
    %54 = vector.broadcast %53 : vector<1x32xf32> to vector<8x32xf32>
    %c9 = arith.constant 9 : index
    %c0_22 = arith.constant 0 : index
    %55 = vector.load %arg4[%c9, %c0_22] : memref<16x384xf32, #tpu.memory_space<vmem>>, vector<1x32xf32>
    %56 = vector.shape_cast %55 : vector<1x32xf32> to vector<1x32xf32>
    %57 = vector.broadcast %56 : vector<1x32xf32> to vector<8x32xf32>
    %c10 = arith.constant 10 : index
    %c0_23 = arith.constant 0 : index
    %58 = vector.load %arg4[%c10, %c0_23] : memref<16x384xf32, #tpu.memory_space<vmem>>, vector<1x32xf32>
    %59 = vector.shape_cast %58 : vector<1x32xf32> to vector<1x32xf32>
    %60 = vector.broadcast %59 : vector<1x32xf32> to vector<8x32xf32>
    %c0_24 = arith.constant 0 : index
    %c0_25 = arith.constant 0 : index
    %c0_26 = arith.constant 0 : index
    %61 = vector.load %arg2[%c0_24, %c0_25, %c0_26] : memref<1x1x8xf32, #tpu.memory_space<vmem>>, vector<1x1x8xf32>
    %62 = vector.shape_cast %61 : vector<1x1x8xf32> to vector<1x8xf32>
    %cst_27 = arith.constant 0.000000e+00 : f32
    %63 = vector.broadcast %cst_27 : f32 to vector<1x8xf32>
    %64 = arith.cmpf ogt, %62, %63 : vector<1x8xf32>
    %cst_28 = arith.constant 0.000000e+00 : f32
    %cst_29 = arith.constant -1.000000e+09 : f32
    %65 = vector.broadcast %cst_28 : f32 to vector<1x8xf32>
    %66 = vector.broadcast %cst_29 : f32 to vector<1x8xf32>
    %67 = arith.select %64, %65, %66 : vector<1x8xi1>, vector<1x8xf32>
    %68 = vector.shape_cast %67 : vector<1x8xf32> to vector<1x8xf32>
    %69 = vector.broadcast %68 : vector<1x8xf32> to vector<32x8xf32>
    %70 = tpu.iota {dimensions = array<i32: 2>} : vector<4x1x128xi32>
    %71 = tpu.iota {dimensions = array<i32: 0>} : vector<4x1x128xi32>
    %c8_i32 = arith.constant 8 : i32
    %72 = vector.broadcast %c8_i32 : i32 to vector<4x1x128xi32>
    %73 = arith.muli %71, %72 : vector<4x1x128xi32>
    %74 = arith.cmpi sge, %70, %73 : vector<4x1x128xi32>
    %c1_i32 = arith.constant 1 : i32
    %75 = vector.broadcast %c1_i32 : i32 to vector<4x1x128xi32>
    %76 = arith.addi %71, %75 : vector<4x1x128xi32>
    %c8_i32_30 = arith.constant 8 : i32
    %77 = vector.broadcast %c8_i32_30 : i32 to vector<4x1x128xi32>
    %78 = arith.muli %76, %77 : vector<4x1x128xi32>
    %79 = arith.cmpi slt, %70, %78 : vector<4x1x128xi32>
    %80 = arith.andi %74, %79 : vector<4x1x128xi1>
    %cst_31 = arith.constant 1.000000e+00 : f32
    %cst_32 = arith.constant 0.000000e+00 : f32
    %81 = vector.broadcast %cst_31 : f32 to vector<4x1x128xf32>
    %82 = vector.broadcast %cst_32 : f32 to vector<4x1x128xf32>
    %83 = arith.select %80, %81, %82 : vector<4x1x128xi1>, vector<4x1x128xf32>
    %c0_i32 = arith.constant 0 : i32
    %84 = arith.truncf %32 : vector<8x32xf32> to vector<8x32xbf16>
    %cst_33 = arith.constant dense<0.000000e+00> : vector<8x384xf32>
    %85 = tpu.matmul %84, %33, %cst_33 {dimension_numbers = #tpu.dot_dimension_numbers<[1], [0], [0], [1], [0, 0, 1, 1], [], []>} : vector<8x32xbf16>, vector<32x384xbf16>, vector<8x384xf32> -> vector<8x384xf32>
    %86 = arith.addf %85, %39 : vector<8x384xf32>
    %87 = vector.extract_strided_slice %86 {offsets = [0, 0], sizes = [8, 128], strides = [1, 1]} : vector<8x384xf32> to vector<8x128xf32>
    %88 = vector.extract_strided_slice %86 {offsets = [0, 128], sizes = [8, 128], strides = [1, 1]} : vector<8x384xf32> to vector<8x128xf32>
    %89 = vector.extract_strided_slice %86 {offsets = [0, 256], sizes = [8, 128], strides = [1, 1]} : vector<8x384xf32> to vector<8x128xf32>
    %90 = vector.shape_cast %87 : vector<8x128xf32> to vector<1x8x128xf32>
    %91 = vector.broadcast %90 : vector<1x8x128xf32> to vector<4x8x128xf32>
    %92 = vector.broadcast %83 : vector<4x1x128xf32> to vector<4x8x128xf32>
    %93 = arith.mulf %91, %92 : vector<4x8x128xf32>
    %94 = vector.shape_cast %93 : vector<4x8x128xf32> to vector<32x128xf32>
    %95 = arith.truncf %94 : vector<32x128xf32> to vector<32x128xbf16>
    %96 = arith.truncf %88 : vector<8x128xf32> to vector<8x128xbf16>
    %cst_34 = arith.constant dense<0.000000e+00> : vector<32x8xf32>
    %97 = tpu.matmul %95, %96, %cst_34 {dimension_numbers = #tpu.dot_dimension_numbers<[1], [1], [0], [0], [0, 0, 1, 0], [], []>} : vector<32x128xbf16>, vector<8x128xbf16>, vector<32x8xf32> -> vector<32x8xf32>
    %98 = arith.addf %97, %69 : vector<32x8xf32>
    %cst_35 = arith.constant dense<0xFF800000> : vector<32xf32>
    %99 = vector.multi_reduction <maximumf>, %98, %cst_35 [1] : vector<32x8xf32> to vector<32xf32>
    %100 = vector.shape_cast %99 : vector<32xf32> to vector<32x1xf32>
    %101 = vector.broadcast %100 : vector<32x1xf32> to vector<32x8xf32>
    %102 = arith.subf %98, %101 : vector<32x8xf32>
    %103 = math.exp %102 : vector<32x8xf32>
    %cst_36 = arith.constant dense<0.000000e+00> : vector<32xf32>
    %104 = vector.multi_reduction <add>, %103, %cst_36 [1] : vector<32x8xf32> to vector<32xf32>
    %105 = vector.shape_cast %104 : vector<32xf32> to vector<32x1xf32>
    %106 = tpu.reciprocal %105 {approx = true} : vector<32x1xf32> -> vector<32x1xf32>
    %107 = vector.broadcast %106 : vector<32x1xf32> to vector<32x8xf32>
    %108 = arith.mulf %103, %107 : vector<32x8xf32>
    %109 = arith.truncf %108 : vector<32x8xf32> to vector<32x8xbf16>
    %110 = arith.truncf %89 : vector<8x128xf32> to vector<8x128xbf16>
    %cst_37 = arith.constant dense<0.000000e+00> : vector<32x128xf32>
    %111 = tpu.matmul %109, %110, %cst_37 {dimension_numbers = #tpu.dot_dimension_numbers<[1], [0], [0], [1], [0, 0, 1, 1], [], []>} : vector<32x8xbf16>, vector<8x128xbf16>, vector<32x128xf32> -> vector<32x128xf32>
    %112 = vector.shape_cast %111 : vector<32x128xf32> to vector<4x8x128xf32>
    %113 = vector.broadcast %83 : vector<4x1x128xf32> to vector<4x8x128xf32>
    %114 = arith.mulf %112, %113 : vector<4x8x128xf32>
    %cst_38 = arith.constant dense<0.000000e+00> : vector<8x128xf32>
    %115 = vector.multi_reduction <add>, %114, %cst_38 [0] : vector<4x8x128xf32> to vector<8x128xf32>
    %116 = arith.truncf %115 : vector<8x128xf32> to vector<8x128xbf16>
    %cst_39 = arith.constant dense<0.000000e+00> : vector<8x32xf32>
    %117 = tpu.matmul %116, %34, %cst_39 {dimension_numbers = #tpu.dot_dimension_numbers<[1], [0], [0], [1], [0, 0, 1, 1], [], []>} : vector<8x128xbf16>, vector<128x32xbf16>, vector<8x32xf32> -> vector<8x32xf32>
    %118 = arith.addf %117, %42 : vector<8x32xf32>
    %119 = arith.addf %32, %118 : vector<8x32xf32>
    %cst_40 = arith.constant dense<0.000000e+00> : vector<8xf32>
    %120 = vector.multi_reduction <add>, %119, %cst_40 [1] : vector<8x32xf32> to vector<8xf32>
    %121 = vector.shape_cast %120 : vector<8xf32> to vector<8x1xf32>
    %cst_41 = arith.constant 3.200000e+01 : f32
    %122 = vector.broadcast %cst_41 : f32 to vector<8x1xf32>
    %123 = arith.divf %121, %122 : vector<8x1xf32>
    %124 = vector.broadcast %123 : vector<8x1xf32> to vector<8x32xf32>
    %125 = arith.subf %119, %124 : vector<8x32xf32>
    %126 = vector.broadcast %123 : vector<8x1xf32> to vector<8x32xf32>
    %127 = arith.subf %119, %126 : vector<8x32xf32>
    %128 = arith.mulf %125, %127 : vector<8x32xf32>
    %cst_42 = arith.constant dense<0.000000e+00> : vector<8xf32>
    %129 = vector.multi_reduction <add>, %128, %cst_42 [1] : vector<8x32xf32> to vector<8xf32>
    %130 = vector.shape_cast %129 : vector<8xf32> to vector<8x1xf32>
    %cst_43 = arith.constant 3.200000e+01 : f32
    %131 = vector.broadcast %cst_43 : f32 to vector<8x1xf32>
    %132 = arith.divf %130, %131 : vector<8x1xf32>
    %133 = vector.broadcast %123 : vector<8x1xf32> to vector<8x32xf32>
    %134 = arith.subf %119, %133 : vector<8x32xf32>
    %cst_44 = arith.constant 9.99999996E-13 : f32
    %135 = vector.broadcast %cst_44 : f32 to vector<8x1xf32>
    %136 = arith.addf %132, %135 : vector<8x1xf32>
    %137 = math.rsqrt %136 : vector<8x1xf32>
    %138 = vector.broadcast %137 : vector<8x1xf32> to vector<8x32xf32>
    %139 = arith.mulf %134, %138 : vector<8x32xf32>
    %140 = arith.mulf %139, %45 : vector<8x32xf32>
    %141 = arith.addf %140, %48 : vector<8x32xf32>
    %142 = arith.truncf %141 : vector<8x32xf32> to vector<8x32xbf16>
    %cst_45 = arith.constant dense<0.000000e+00> : vector<8x64xf32>
    %143 = tpu.matmul %142, %35, %cst_45 {dimension_numbers = #tpu.dot_dimension_numbers<[1], [0], [0], [1], [0, 0, 1, 1], [], []>} : vector<8x32xbf16>, vector<32x64xbf16>, vector<8x64xf32> -> vector<8x64xf32>
    %144 = arith.addf %143, %51 : vector<8x64xf32>
    %cst_46 = arith.constant 5.000000e-01 : f32
    %145 = vector.broadcast %cst_46 : f32 to vector<8x64xf32>
    %146 = arith.mulf %145, %144 : vector<8x64xf32>
    %cst_47 = arith.constant 4.471500e-02 : f32
    %147 = vector.broadcast %cst_47 : f32 to vector<8x64xf32>
    %148 = arith.mulf %147, %144 : vector<8x64xf32>
    %149 = arith.mulf %148, %144 : vector<8x64xf32>
    %150 = arith.mulf %149, %144 : vector<8x64xf32>
    %151 = arith.addf %144, %150 : vector<8x64xf32>
    %cst_48 = arith.constant 0.797884583 : f32
    %152 = vector.broadcast %cst_48 : f32 to vector<8x64xf32>
    %153 = arith.mulf %152, %151 : vector<8x64xf32>
    %154 = math.tanh %153 : vector<8x64xf32>
    %cst_49 = arith.constant 1.000000e+00 : f32
    %155 = vector.broadcast %cst_49 : f32 to vector<8x64xf32>
    %156 = arith.addf %155, %154 : vector<8x64xf32>
    %157 = arith.mulf %146, %156 : vector<8x64xf32>
    %158 = arith.truncf %157 : vector<8x64xf32> to vector<8x64xbf16>
    %cst_50 = arith.constant dense<0.000000e+00> : vector<8x32xf32>
    %159 = tpu.matmul %158, %36, %cst_50 {dimension_numbers = #tpu.dot_dimension_numbers<[1], [0], [0], [1], [0, 0, 1, 1], [], []>} : vector<8x64xbf16>, vector<64x32xbf16>, vector<8x32xf32> -> vector<8x32xf32>
    %160 = arith.addf %159, %54 : vector<8x32xf32>
    %161 = arith.addf %160, %141 : vector<8x32xf32>
    %cst_51 = arith.constant dense<0.000000e+00> : vector<8xf32>
    %162 = vector.multi_reduction <add>, %161, %cst_51 [1] : vector<8x32xf32> to vector<8xf32>
    %163 = vector.shape_cast %162 : vector<8xf32> to vector<8x1xf32>
    %cst_52 = arith.constant 3.200000e+01 : f32
    %164 = vector.broadcast %cst_52 : f32 to vector<8x1xf32>
    %165 = arith.divf %163, %164 : vector<8x1xf32>
    %166 = vector.broadcast %165 : vector<8x1xf32> to vector<8x32xf32>
    %167 = arith.subf %161, %166 : vector<8x32xf32>
    %168 = vector.broadcast %165 : vector<8x1xf32> to vector<8x32xf32>
    %169 = arith.subf %161, %168 : vector<8x32xf32>
    %170 = arith.mulf %167, %169 : vector<8x32xf32>
    %cst_53 = arith.constant dense<0.000000e+00> : vector<8xf32>
    %171 = vector.multi_reduction <add>, %170, %cst_53 [1] : vector<8x32xf32> to vector<8xf32>
    %172 = vector.shape_cast %171 : vector<8xf32> to vector<8x1xf32>
    %cst_54 = arith.constant 3.200000e+01 : f32
    %173 = vector.broadcast %cst_54 : f32 to vector<8x1xf32>
    %174 = arith.divf %172, %173 : vector<8x1xf32>
    %175 = vector.broadcast %165 : vector<8x1xf32> to vector<8x32xf32>
    %176 = arith.subf %161, %175 : vector<8x32xf32>
    %cst_55 = arith.constant 9.99999996E-13 : f32
    %177 = vector.broadcast %cst_55 : f32 to vector<8x1xf32>
    %178 = arith.addf %174, %177 : vector<8x1xf32>
    %179 = math.rsqrt %178 : vector<8x1xf32>
    %180 = vector.broadcast %179 : vector<8x1xf32> to vector<8x32xf32>
    %181 = arith.mulf %176, %180 : vector<8x32xf32>
    %182 = arith.mulf %181, %57 : vector<8x32xf32>
    %183 = arith.addf %182, %60 : vector<8x32xf32>
    %c1_i32_56 = arith.constant 1 : i32
    %184 = arith.truncf %183 : vector<8x32xf32> to vector<8x32xbf16>
    %cst_57 = arith.constant dense<0.000000e+00> : vector<8x384xf32>
    %185 = tpu.matmul %184, %33, %cst_57 {dimension_numbers = #tpu.dot_dimension_numbers<[1], [0], [0], [1], [0, 0, 1, 1], [], []>} : vector<8x32xbf16>, vector<32x384xbf16>, vector<8x384xf32> -> vector<8x384xf32>
    %186 = arith.addf %185, %39 : vector<8x384xf32>
    %187 = vector.extract_strided_slice %186 {offsets = [0, 0], sizes = [8, 128], strides = [1, 1]} : vector<8x384xf32> to vector<8x128xf32>
    %188 = vector.extract_strided_slice %186 {offsets = [0, 128], sizes = [8, 128], strides = [1, 1]} : vector<8x384xf32> to vector<8x128xf32>
    %189 = vector.extract_strided_slice %186 {offsets = [0, 256], sizes = [8, 128], strides = [1, 1]} : vector<8x384xf32> to vector<8x128xf32>
    %190 = vector.shape_cast %187 : vector<8x128xf32> to vector<1x8x128xf32>
    %191 = vector.broadcast %190 : vector<1x8x128xf32> to vector<4x8x128xf32>
    %192 = vector.broadcast %83 : vector<4x1x128xf32> to vector<4x8x128xf32>
    %193 = arith.mulf %191, %192 : vector<4x8x128xf32>
    %194 = vector.shape_cast %193 : vector<4x8x128xf32> to vector<32x128xf32>
    %195 = arith.truncf %194 : vector<32x128xf32> to vector<32x128xbf16>
    %196 = arith.truncf %188 : vector<8x128xf32> to vector<8x128xbf16>
    %cst_58 = arith.constant dense<0.000000e+00> : vector<32x8xf32>
    %197 = tpu.matmul %195, %196, %cst_58 {dimension_numbers = #tpu.dot_dimension_numbers<[1], [1], [0], [0], [0, 0, 1, 0], [], []>} : vector<32x128xbf16>, vector<8x128xbf16>, vector<32x8xf32> -> vector<32x8xf32>
    %198 = arith.addf %197, %69 : vector<32x8xf32>
    %cst_59 = arith.constant dense<0xFF800000> : vector<32xf32>
    %199 = vector.multi_reduction <maximumf>, %198, %cst_59 [1] : vector<32x8xf32> to vector<32xf32>
    %200 = vector.shape_cast %199 : vector<32xf32> to vector<32x1xf32>
    %201 = vector.broadcast %200 : vector<32x1xf32> to vector<32x8xf32>
    %202 = arith.subf %198, %201 : vector<32x8xf32>
    %203 = math.exp %202 : vector<32x8xf32>
    %cst_60 = arith.constant dense<0.000000e+00> : vector<32xf32>
    %204 = vector.multi_reduction <add>, %203, %cst_60 [1] : vector<32x8xf32> to vector<32xf32>
    %205 = vector.shape_cast %204 : vector<32xf32> to vector<32x1xf32>
    %206 = tpu.reciprocal %205 {approx = true} : vector<32x1xf32> -> vector<32x1xf32>
    %207 = vector.broadcast %206 : vector<32x1xf32> to vector<32x8xf32>
    %208 = arith.mulf %203, %207 : vector<32x8xf32>
    %209 = arith.truncf %208 : vector<32x8xf32> to vector<32x8xbf16>
    %210 = arith.truncf %189 : vector<8x128xf32> to vector<8x128xbf16>
    %cst_61 = arith.constant dense<0.000000e+00> : vector<32x128xf32>
    %211 = tpu.matmul %209, %210, %cst_61 {dimension_numbers = #tpu.dot_dimension_numbers<[1], [0], [0], [1], [0, 0, 1, 1], [], []>} : vector<32x8xbf16>, vector<8x128xbf16>, vector<32x128xf32> -> vector<32x128xf32>
    %212 = vector.shape_cast %211 : vector<32x128xf32> to vector<4x8x128xf32>
    %213 = vector.broadcast %83 : vector<4x1x128xf32> to vector<4x8x128xf32>
    %214 = arith.mulf %212, %213 : vector<4x8x128xf32>
    %cst_62 = arith.constant dense<0.000000e+00> : vector<8x128xf32>
    %215 = vector.multi_reduction <add>, %214, %cst_62 [0] : vector<4x8x128xf32> to vector<8x128xf32>
    %216 = arith.truncf %215 : vector<8x128xf32> to vector<8x128xbf16>
    %cst_63 = arith.constant dense<0.000000e+00> : vector<8x32xf32>
    %217 = tpu.matmul %216, %34, %cst_63 {dimension_numbers = #tpu.dot_dimension_numbers<[1], [0], [0], [1], [0, 0, 1, 1], [], []>} : vector<8x128xbf16>, vector<128x32xbf16>, vector<8x32xf32> -> vector<8x32xf32>
    %218 = arith.addf %217, %42 : vector<8x32xf32>
    %219 = arith.addf %183, %218 : vector<8x32xf32>
    %cst_64 = arith.constant dense<0.000000e+00> : vector<8xf32>
    %220 = vector.multi_reduction <add>, %219, %cst_64 [1] : vector<8x32xf32> to vector<8xf32>
    %221 = vector.shape_cast %220 : vector<8xf32> to vector<8x1xf32>
    %cst_65 = arith.constant 3.200000e+01 : f32
    %222 = vector.broadcast %cst_65 : f32 to vector<8x1xf32>
    %223 = arith.divf %221, %222 : vector<8x1xf32>
    %224 = vector.broadcast %223 : vector<8x1xf32> to vector<8x32xf32>
    %225 = arith.subf %219, %224 : vector<8x32xf32>
    %226 = vector.broadcast %223 : vector<8x1xf32> to vector<8x32xf32>
    %227 = arith.subf %219, %226 : vector<8x32xf32>
    %228 = arith.mulf %225, %227 : vector<8x32xf32>
    %cst_66 = arith.constant dense<0.000000e+00> : vector<8xf32>
    %229 = vector.multi_reduction <add>, %228, %cst_66 [1] : vector<8x32xf32> to vector<8xf32>
    %230 = vector.shape_cast %229 : vector<8xf32> to vector<8x1xf32>
    %cst_67 = arith.constant 3.200000e+01 : f32
    %231 = vector.broadcast %cst_67 : f32 to vector<8x1xf32>
    %232 = arith.divf %230, %231 : vector<8x1xf32>
    %233 = vector.broadcast %223 : vector<8x1xf32> to vector<8x32xf32>
    %234 = arith.subf %219, %233 : vector<8x32xf32>
    %cst_68 = arith.constant 9.99999996E-13 : f32
    %235 = vector.broadcast %cst_68 : f32 to vector<8x1xf32>
    %236 = arith.addf %232, %235 : vector<8x1xf32>
    %237 = math.rsqrt %236 : vector<8x1xf32>
    %238 = vector.broadcast %237 : vector<8x1xf32> to vector<8x32xf32>
    %239 = arith.mulf %234, %238 : vector<8x32xf32>
    %240 = arith.mulf %239, %45 : vector<8x32xf32>
    %241 = arith.addf %240, %48 : vector<8x32xf32>
    %242 = arith.truncf %241 : vector<8x32xf32> to vector<8x32xbf16>
    %cst_69 = arith.constant dense<0.000000e+00> : vector<8x64xf32>
    %243 = tpu.matmul %242, %35, %cst_69 {dimension_numbers = #tpu.dot_dimension_numbers<[1], [0], [0], [1], [0, 0, 1, 1], [], []>} : vector<8x32xbf16>, vector<32x64xbf16>, vector<8x64xf32> -> vector<8x64xf32>
    %244 = arith.addf %243, %51 : vector<8x64xf32>
    %cst_70 = arith.constant 5.000000e-01 : f32
    %245 = vector.broadcast %cst_70 : f32 to vector<8x64xf32>
    %246 = arith.mulf %245, %244 : vector<8x64xf32>
    %cst_71 = arith.constant 4.471500e-02 : f32
    %247 = vector.broadcast %cst_71 : f32 to vector<8x64xf32>
    %248 = arith.mulf %247, %244 : vector<8x64xf32>
    %249 = arith.mulf %248, %244 : vector<8x64xf32>
    %250 = arith.mulf %249, %244 : vector<8x64xf32>
    %251 = arith.addf %244, %250 : vector<8x64xf32>
    %cst_72 = arith.constant 0.797884583 : f32
    %252 = vector.broadcast %cst_72 : f32 to vector<8x64xf32>
    %253 = arith.mulf %252, %251 : vector<8x64xf32>
    %254 = math.tanh %253 : vector<8x64xf32>
    %cst_73 = arith.constant 1.000000e+00 : f32
    %255 = vector.broadcast %cst_73 : f32 to vector<8x64xf32>
    %256 = arith.addf %255, %254 : vector<8x64xf32>
    %257 = arith.mulf %246, %256 : vector<8x64xf32>
    %258 = arith.truncf %257 : vector<8x64xf32> to vector<8x64xbf16>
    %cst_74 = arith.constant dense<0.000000e+00> : vector<8x32xf32>
    %259 = tpu.matmul %258, %36, %cst_74 {dimension_numbers = #tpu.dot_dimension_numbers<[1], [0], [0], [1], [0, 0, 1, 1], [], []>} : vector<8x64xbf16>, vector<64x32xbf16>, vector<8x32xf32> -> vector<8x32xf32>
    %260 = arith.addf %259, %54 : vector<8x32xf32>
    %261 = arith.addf %260, %241 : vector<8x32xf32>
    %cst_75 = arith.constant dense<0.000000e+00> : vector<8xf32>
    %262 = vector.multi_reduction <add>, %261, %cst_75 [1] : vector<8x32xf32> to vector<8xf32>
    %263 = vector.shape_cast %262 : vector<8xf32> to vector<8x1xf32>
    %cst_76 = arith.constant 3.200000e+01 : f32
    %264 = vector.broadcast %cst_76 : f32 to vector<8x1xf32>
    %265 = arith.divf %263, %264 : vector<8x1xf32>
    %266 = vector.broadcast %265 : vector<8x1xf32> to vector<8x32xf32>
    %267 = arith.subf %261, %266 : vector<8x32xf32>
    %268 = vector.broadcast %265 : vector<8x1xf32> to vector<8x32xf32>
    %269 = arith.subf %261, %268 : vector<8x32xf32>
    %270 = arith.mulf %267, %269 : vector<8x32xf32>
    %cst_77 = arith.constant dense<0.000000e+00> : vector<8xf32>
    %271 = vector.multi_reduction <add>, %270, %cst_77 [1] : vector<8x32xf32> to vector<8xf32>
    %272 = vector.shape_cast %271 : vector<8xf32> to vector<8x1xf32>
    %cst_78 = arith.constant 3.200000e+01 : f32
    %273 = vector.broadcast %cst_78 : f32 to vector<8x1xf32>
    %274 = arith.divf %272, %273 : vector<8x1xf32>
    %275 = vector.broadcast %265 : vector<8x1xf32> to vector<8x32xf32>
    %276 = arith.subf %261, %275 : vector<8x32xf32>
    %cst_79 = arith.constant 9.99999996E-13 : f32
    %277 = vector.broadcast %cst_79 : f32 to vector<8x1xf32>
    %278 = arith.addf %274, %277 : vector<8x1xf32>
    %279 = math.rsqrt %278 : vector<8x1xf32>
    %280 = vector.broadcast %279 : vector<8x1xf32> to vector<8x32xf32>
    %281 = arith.mulf %276, %280 : vector<8x32xf32>
    %282 = arith.mulf %281, %57 : vector<8x32xf32>
    %283 = arith.addf %282, %60 : vector<8x32xf32>
    %c272 = arith.constant 272 : index
    %c0_80 = arith.constant 0 : index
    %284 = vector.load %arg3[%c272, %c0_80] : memref<320x384xbf16, #tpu.memory_space<vmem>>, vector<32x16xbf16>
    %285 = arith.truncf %283 : vector<8x32xf32> to vector<8x32xbf16>
    %cst_81 = arith.constant dense<0.000000e+00> : vector<8x16xf32>
    %286 = tpu.matmul %285, %284, %cst_81 {dimension_numbers = #tpu.dot_dimension_numbers<[1], [0], [0], [1], [0, 0, 1, 1], [], []>} : vector<8x32xbf16>, vector<32x16xbf16>, vector<8x16xf32> -> vector<8x16xf32>
    %c11 = arith.constant 11 : index
    %c0_82 = arith.constant 0 : index
    %287 = vector.load %arg4[%c11, %c0_82] : memref<16x384xf32, #tpu.memory_space<vmem>>, vector<1x16xf32>
    %288 = vector.broadcast %287 : vector<1x16xf32> to vector<8x16xf32>
    %289 = arith.addf %286, %288 : vector<8x16xf32>
    %cst_83 = arith.constant 5.000000e-01 : f32
    %290 = vector.broadcast %cst_83 : f32 to vector<8x16xf32>
    %291 = arith.mulf %290, %289 : vector<8x16xf32>
    %cst_84 = arith.constant 4.471500e-02 : f32
    %292 = vector.broadcast %cst_84 : f32 to vector<8x16xf32>
    %293 = arith.mulf %292, %289 : vector<8x16xf32>
    %294 = arith.mulf %293, %289 : vector<8x16xf32>
    %295 = arith.mulf %294, %289 : vector<8x16xf32>
    %296 = arith.addf %289, %295 : vector<8x16xf32>
    %cst_85 = arith.constant 0.797884583 : f32
    %297 = vector.broadcast %cst_85 : f32 to vector<8x16xf32>
    %298 = arith.mulf %297, %296 : vector<8x16xf32>
    %299 = math.tanh %298 : vector<8x16xf32>
    %cst_86 = arith.constant 1.000000e+00 : f32
    %300 = vector.broadcast %cst_86 : f32 to vector<8x16xf32>
    %301 = arith.addf %300, %299 : vector<8x16xf32>
    %302 = arith.mulf %291, %301 : vector<8x16xf32>
    %c12 = arith.constant 12 : index
    %c0_87 = arith.constant 0 : index
    %303 = vector.load %arg4[%c12, %c0_87] : memref<16x384xf32, #tpu.memory_space<vmem>>, vector<1x16xf32>
    %c13 = arith.constant 13 : index
    %c0_88 = arith.constant 0 : index
    %304 = vector.load %arg4[%c13, %c0_88] : memref<16x384xf32, #tpu.memory_space<vmem>>, vector<1x16xf32>
    %cst_89 = arith.constant dense<0.000000e+00> : vector<8xf32>
    %305 = vector.multi_reduction <add>, %302, %cst_89 [1] : vector<8x16xf32> to vector<8xf32>
    %306 = vector.shape_cast %305 : vector<8xf32> to vector<8x1xf32>
    %cst_90 = arith.constant 1.600000e+01 : f32
    %307 = vector.broadcast %cst_90 : f32 to vector<8x1xf32>
    %308 = arith.divf %306, %307 : vector<8x1xf32>
    %309 = vector.broadcast %308 : vector<8x1xf32> to vector<8x16xf32>
    %310 = arith.subf %302, %309 : vector<8x16xf32>
    %311 = vector.broadcast %308 : vector<8x1xf32> to vector<8x16xf32>
    %312 = arith.subf %302, %311 : vector<8x16xf32>
    %313 = arith.mulf %310, %312 : vector<8x16xf32>
    %cst_91 = arith.constant dense<0.000000e+00> : vector<8xf32>
    %314 = vector.multi_reduction <add>, %313, %cst_91 [1] : vector<8x16xf32> to vector<8xf32>
    %315 = vector.shape_cast %314 : vector<8xf32> to vector<8x1xf32>
    %cst_92 = arith.constant 1.600000e+01 : f32
    %316 = vector.broadcast %cst_92 : f32 to vector<8x1xf32>
    %317 = arith.divf %315, %316 : vector<8x1xf32>
    %318 = vector.broadcast %308 : vector<8x1xf32> to vector<8x16xf32>
    %319 = arith.subf %302, %318 : vector<8x16xf32>
    %cst_93 = arith.constant 9.99999996E-13 : f32
    %320 = vector.broadcast %cst_93 : f32 to vector<8x1xf32>
    %321 = arith.addf %317, %320 : vector<8x1xf32>
    %322 = math.rsqrt %321 : vector<8x1xf32>
    %323 = vector.broadcast %322 : vector<8x1xf32> to vector<8x16xf32>
    %324 = arith.mulf %319, %323 : vector<8x16xf32>
    %325 = vector.broadcast %303 : vector<1x16xf32> to vector<8x16xf32>
    %326 = arith.mulf %324, %325 : vector<8x16xf32>
    %327 = vector.broadcast %304 : vector<1x16xf32> to vector<8x16xf32>
    %328 = arith.addf %326, %327 : vector<8x16xf32>
    %c304 = arith.constant 304 : index
    %c0_94 = arith.constant 0 : index
    %329 = vector.load %arg3[%c304, %c0_94] : memref<320x384xbf16, #tpu.memory_space<vmem>>, vector<16x128xbf16>
    %330 = arith.truncf %328 : vector<8x16xf32> to vector<8x16xbf16>
    %cst_95 = arith.constant dense<0.000000e+00> : vector<8x128xf32>
    %331 = tpu.matmul %330, %329, %cst_95 {dimension_numbers = #tpu.dot_dimension_numbers<[1], [0], [0], [1], [0, 0, 1, 1], [], []>} : vector<8x16xbf16>, vector<16x128xbf16>, vector<8x128xf32> -> vector<8x128xf32>
    %c14 = arith.constant 14 : index
    %c0_96 = arith.constant 0 : index
    %332 = vector.load %arg4[%c14, %c0_96] : memref<16x384xf32, #tpu.memory_space<vmem>>, vector<1x128xf32>
    %333 = vector.broadcast %332 : vector<1x128xf32> to vector<8x128xf32>
    %334 = arith.addf %331, %333 : vector<8x128xf32>
    %c0_97 = arith.constant 0 : index
    %c0_98 = arith.constant 0 : index
    %335 = vector.load %arg5[%c0_97, %c0_98] : memref<8x128xf32, #tpu.memory_space<vmem>>, vector<8x128xf32>
    tpu.vector_store %arg5[%c0_97, %c0_98], %334 {strides = array<i32>} : memref<8x128xf32, #tpu.memory_space<vmem>>, vector<8x128xf32>,
    return
  }
  func.func @transform_0(%arg0: i32) -> (i32, i32) {
    %c0_i32 = arith.constant 0 : i32
    %c0_i32_0 = arith.constant 0 : i32
    return %arg0, %c0_i32 : i32, i32
  }
  func.func @transform_1(%arg0: i32) -> (i32, i32, i32) {
    %c0_i32 = arith.constant 0 : i32
    %c0_i32_0 = arith.constant 0 : i32
    %c0_i32_1 = arith.constant 0 : i32
    return %arg0, %c0_i32, %c0_i32_0 : i32, i32, i32
  }
  func.func @transform_2(%arg0: i32) -> (i32, i32) {
    %c0_i32 = arith.constant 0 : i32
    %c0_i32_0 = arith.constant 0 : i32
    %c0_i32_1 = arith.constant 0 : i32
    return %c0_i32, %c0_i32_0 : i32, i32
  }
  func.func @transform_3(%arg0: i32) -> (i32, i32) {
    %c0_i32 = arith.constant 0 : i32
    %c0_i32_0 = arith.constant 0 : i32
    %c0_i32_1 = arith.constant 0 : i32
    return %c0_i32, %c0_i32_0 : i32, i32
  }
  func.func @transform_4(%arg0: i32) -> (i32, i32) {
    %c0_i32 = arith.constant 0 : i32
    %c0_i32_0 = arith.constant 0 : i32
    return %arg0, %c0_i32 : i32, i32
  }
}

</mosaic_0001>

<llo_original>
// kernel: albert_maskfill_forward.1
$region0: #{albert_maskfill_forward.1}
  #allocation0 [shape = 'u32[]', space=smem, size = 0x4, offset = 0x4, fixed_abs, tag = 'smem constant byte address 0x4 - core index']
  #allocation1 [shape = 'u32[144,128]{1,0:T(1,128)}', space=vmem, size = 0x12000, scoped, tag = 'internal scratch']
  %s0 = inlined_call_operand.vmem [shape: f32[16,16], index: 0, kind: input, shape index: {}]
  %s1 = inlined_call_operand.vmem [shape: f32[2,1,8], index: 1, kind: input, shape index: {}]
  %s2 = inlined_call_operand.hbm [shape: bf16[320,384], index: 2, kind: input, shape index: {}]
  %s3 = inlined_call_operand.vmem [shape: f32[16,384], index: 3, kind: input, shape index: {}]
  %s4 = inlined_call_operand.vmem [shape: f32[16,128], index: 4, kind: output, shape index: {}]
  %s5 = sld [smem:[#allocation0]]
  $region53: #{albert_maskfill_forward.1} parent=0
    _
  %s7 = ssub.s32 1, %s5
  %s8 = scalar_select 0, %s7, %s5
  $region1: #{albert_maskfill_forward.1} parent=0
    #allocation2 [shape = 'u8[245760]{0}', space=vmem, size = 0x3c000, scoped, tag = 'input window, operand 2, single buffered']
    #allocation3 [shape = 's32[2]{0}', space=sflag, size = 0x8, scoped, tag = 'scoped memory for albert_maskfill_forward.1']
    %9 = vsyncpa [#allocation3], 0
    loop: start=0, step=1, limit=4
    $region2: #{albert_maskfill_forward.1} parent=1 // loop_pre_header
      _
    $region3: #{albert_maskfill_forward.1} parent=1 // loop_header
      %s11 = sphi 0, %s15
      %p12 = scmp.ge.s32.totalorder %s11, 4
      %s21 = sphi 0, %s23
      %s24 = sphi 0, %s21
      %s25 = sphi 0, %s24
      %s41 = sphi 0, %s25
      %s47 = sphi 0, %s49
      %s50 = sphi 0, %s47
      %s51 = sphi 0, %s50
      %s67 = sphi 0, %s51
      %s71 = sphi 0, %s71
      %s73 = sphi 0, %s71
      %s74 = sphi 0, %s73
      %s88 = sphi 0, %s74
      %s92 = sphi 0, %s92
      %s94 = sphi 0, %s92
      %s95 = sphi 0, %s94
      %s109 = sphi 0, %s95
      %s115 = sphi 0, %s117
      %s118 = sphi 0, %s115
      %s119 = sphi 0, %s118
      %s135 = sphi 0, %s119
    $region4: #{albert_maskfill_forward.1} parent=1 // loop_header_branch
      %14 = sbr.rel (%p12) target = $region8
    $region5: #{albert_maskfill_forward.1} parent=1 // loop_body
      %s16 = ssub.s32 %s11, 1
      %s17 = ssub.s32 %s11, 2
      %s18 = sadd.s32 %s11, 1
      %s19 = ssub.s32 %s11, %s18
      %p20 = scmp.eq.s32.totalorder %s19, 0
      %s22 = sadd.s32 %s21, 1
      %s23 = scalar_select %p20, %s21, %s22
      %p26 = pneg %p20
      %p27 = scmp.eq.s32.totalorder %s11, 1
      %p28 = por %p26, %p27
      %p29 = scmp.ne.s32.totalorder %s21, %s24
      %p30 = scmp.eq.s32.totalorder %s11, 0
      %p31 = por %p29, %p30
      %p32 = scmp.ne.s32.totalorder %s21, %s24
      %p33 = scmp.eq.s32.totalorder %s16, 1
      %p34 = por %p32, %p33
      %p35 = scmp.ne.s32.totalorder %s24, %s25
      %p36 = scmp.eq.s32.totalorder %s16, 0
      %p37 = por %p35, %p36
      %p38 = scmp.ne.s32.totalorder %s24, %s25
      %p39 = scmp.eq.s32.totalorder %s17, 1
      %p40 = por %p38, %p39
      %p42 = scmp.ne.s32.totalorder %s25, %s41
      %p43 = scmp.eq.s32.totalorder %s17, 0
      %p44 = por %p42, %p43
      %s45 = ssub.s32 %s11, %s18
      %p46 = scmp.eq.s32.totalorder %s45, 0
      %s48 = sadd.s32 %s47, 1
      %s49 = scalar_select %p46, %s47, %s48
      %p52 = pneg %p46
      %p53 = scmp.eq.s32.totalorder %s11, 1
      %p54 = por %p52, %p53
      %p55 = scmp.ne.s32.totalorder %s47, %s50
      %p56 = scmp.eq.s32.totalorder %s11, 0
      %p57 = por %p55, %p56
      %p58 = scmp.ne.s32.totalorder %s47, %s50
      %p59 = scmp.eq.s32.totalorder %s16, 1
      %p60 = por %p58, %p59
      %p61 = scmp.ne.s32.totalorder %s50, %s51
      %p62 = scmp.eq.s32.totalorder %s16, 0
      %p63 = por %p61, %p62
      %p64 = scmp.ne.s32.totalorder %s50, %s51
      %p65 = scmp.eq.s32.totalorder %s17, 1
      %p66 = por %p64, %p65
      %p68 = scmp.ne.s32.totalorder %s51, %s67
      %p69 = scmp.eq.s32.totalorder %s17, 0
      %p70 = por %p68, %p69
      %s72 = sadd.s32 %s71, 1
      %p75 = scmp.eq.s32.totalorder %s11, 1
      %p76 = scmp.ne.s32.totalorder %s71, %s73
      %p77 = scmp.eq.s32.totalorder %s11, 0
      %p78 = por %p76, %p77
      %p79 = scmp.ne.s32.totalorder %s71, %s73
      %p80 = scmp.eq.s32.totalorder %s16, 1
      %p81 = por %p79, %p80
      %p82 = scmp.ne.s32.totalorder %s73, %s74
      %p83 = scmp.eq.s32.totalorder %s16, 0
      %p84 = por %p82, %p83
      %p85 = scmp.ne.s32.totalorder %s73, %s74
      %p86 = scmp.eq.s32.totalorder %s17, 1
      %p87 = por %p85, %p86
      %p89 = scmp.ne.s32.totalorder %s74, %s88
      %p90 = scmp.eq.s32.totalorder %s17, 0
      %p91 = por %p89, %p90
      %s93 = sadd.s32 %s92, 1
      %p96 = scmp.eq.s32.totalorder %s11, 1
      %p97 = scmp.ne.s32.totalorder %s92, %s94
      %p98 = scmp.eq.s32.totalorder %s11, 0
      %p99 = por %p97, %p98
      %p100 = scmp.ne.s32.totalorder %s92, %s94
      %p101 = scmp.eq.s32.totalorder %s16, 1
      %p102 = por %p100, %p101
      %p103 = scmp.ne.s32.totalorder %s94, %s95
      %p104 = scmp.eq.s32.totalorder %s16, 0
      %p105 = por %p103, %p104
      %p106 = scmp.ne.s32.totalorder %s94, %s95
      %p107 = scmp.eq.s32.totalorder %s17, 1
      %p108 = por %p106, %p107
      %p110 = scmp.ne.s32.totalorder %s95, %s109
      %p111 = scmp.eq.s32.totalorder %s17, 0
      %p112 = por %p110, %p111
      %s113 = ssub.s32 %s11, %s18
      %p114 = scmp.eq.s32.totalorder %s113, 0
      %s116 = sadd.s32 %s115, 1
      %s117 = scalar_select %p114, %s115, %s116
      %p120 = pneg %p114
      %p121 = scmp.eq.s32.totalorder %s11, 1
      %p122 = por %p120, %p121
      %p123 = scmp.ne.s32.totalorder %s115, %s118
      %p124 = scmp.eq.s32.totalorder %s11, 0
      %p125 = por %p123, %p124
      %p126 = scmp.ne.s32.totalorder %s115, %s118
      %p127 = scmp.eq.s32.totalorder %s16, 1
      %p128 = por %p126, %p127
      %p129 = scmp.ne.s32.totalorder %s118, %s119
      %p130 = scmp.eq.s32.totalorder %s16, 0
      %p131 = por %p129, %p130
      %p132 = scmp.ne.s32.totalorder %s118, %s119
      %p133 = scmp.eq.s32.totalorder %s17, 1
      %p134 = por %p132, %p133
      %p136 = scmp.ne.s32.totalorder %s119, %s135
      %p137 = scmp.eq.s32.totalorder %s17, 0
      %p138 = por %p136, %p137
      %p139 = scmp.le.s32.totalorder 1, %s11
      %p140 = scmp.lt.s32.totalorder %s11, 3
      %p141 = pnand %p139, %p140
      %p142 = pneg %p141
      // Predicated region
      $region9: #{albert_maskfill_forward.1} parent=5 // pred_check
        _
      $region10: #{albert_maskfill_forward.1} parent=5 // pred_check_branch
        %144 = sbr.rel (%p141) target = $region12
      $region11: #{albert_maskfill_forward.1} parent=5 // pred_region
        %s145 = ssub.s32 %s11, 1
        // Predicated region
        $region13: #{albert_maskfill_forward.1} parent=11 // pred_check
          %p146 = pneg %p84
        $region14: #{albert_maskfill_forward.1} parent=11 // pred_check_branch
          %148 = sbr.rel (%p146) target = $region16
        $region15: #{albert_maskfill_forward.1} parent=11 // pred_region
          %s150 = ssub.s32 7680, 7680
          %151 = vsyncadd [#allocation3], %s150
          %s152 = sshll.u32 [#allocation2], 4
          %s153 = int_to_ptr.vmem [resolvable:$true] %s152
          %158 = dma.hbm_to_vmem [thread:$0]  %s2, 7680, %s153, [#allocation3], 192, 192, 12
        $region16: #{albert_maskfill_forward.1} parent=11 // pred_fallthru
          _
        // Predicated region
        $region17: #{albert_maskfill_forward.1} parent=11 // pred_check
          %p159 = pneg %p105
        $region18: #{albert_maskfill_forward.1} parent=11 // pred_check_branch
          %161 = sbr.rel (%p159) target = $region20
        $region19: #{albert_maskfill_forward.1} parent=11 // pred_region
          _
        $region20: #{albert_maskfill_forward.1} parent=11 // pred_fallthru
          _
      $region12: #{albert_maskfill_forward.1} parent=5 // pred_fallthru
        _
      %p162 = scmp.lt.s32.totalorder %s11, 2
      // Predicated region
      $region21: #{albert_maskfill_forward.1} parent=5 // pred_check
        %p163 = pneg %p162
      $region22: #{albert_maskfill_forward.1} parent=5 // pred_check_branch
        %165 = sbr.rel (%p163) target = $region24
      $region23: #{albert_maskfill_forward.1} parent=5 // pred_region
        // Predicated region
        $region25: #{albert_maskfill_forward.1} parent=23 // pred_check
          %p166 = pneg %p31
        $region26: #{albert_maskfill_forward.1} parent=23 // pred_check_branch
          %168 = sbr.rel (%p166) target = $region28
        $region27: #{albert_maskfill_forward.1} parent=23 // pred_region
          %p169 = scmp.lt.s32.totalorder %s11, 1
          %s170 = scalar_select %p169, %s11, 1
          %s171 = smul.addr %s170, 8
          %s172 = scalar_lea.vmem %s0, %s171
        $region28: #{albert_maskfill_forward.1} parent=23 // pred_fallthru
          _
        // Predicated region
        $region29: #{albert_maskfill_forward.1} parent=23 // pred_check
          %p173 = pneg %p57
        $region30: #{albert_maskfill_forward.1} parent=23 // pred_check_branch
          %175 = sbr.rel (%p173) target = $region32
        $region31: #{albert_maskfill_forward.1} parent=23 // pred_region
          %p176 = scmp.lt.s32.totalorder %s11, 1
          %s177 = scalar_select %p176, %s11, 1
          %s178 = scalar_lea.vmem %s1, %s177
        $region32: #{albert_maskfill_forward.1} parent=23 // pred_fallthru
          _
      $region24: #{albert_maskfill_forward.1} parent=5 // pred_fallthru
        _
      %p179 = scmp.le.s32.totalorder 1, %s11
      %p180 = scmp.lt.s32.totalorder %s11, 3
      %p181 = pnand %p179, %p180
      %p182 = pneg %p181
      // Predicated region
      $region33: #{albert_maskfill_forward.1} parent=5 // pred_check
        _
      $region34: #{albert_maskfill_forward.1} parent=5 // pred_check_branch
        %184 = sbr.rel (%p181) target = $region36
      $region35: #{albert_maskfill_forward.1} parent=5 // pred_region
        %s185 = ssub.s32 %s11, 1
        // Predicated region
        $region37: #{albert_maskfill_forward.1} parent=35 // pred_check
          %p186 = pneg %p84
        $region38: #{albert_maskfill_forward.1} parent=35 // pred_check_branch
          %188 = sbr.rel (%p186) target = $region40
        $region39: #{albert_maskfill_forward.1} parent=35 // pred_region
          %189 = dma.done [#allocation3], 7680
        $region40: #{albert_maskfill_forward.1} parent=35 // pred_fallthru
          _
        %p190 = scmp.lt.s32.totalorder %s16, 1
        %s191 = scalar_select %p190, %s16, 1
        %s192 = smul.addr %s191, 8
        %s193 = scalar_lea.vmem %s0, %s192
        %p194 = pneg %p37
        %p195 = pneg %p34
        %p196 = scmp.lt.s32.totalorder %s16, 1
        %s197 = scalar_select %p196, %s16, 1
        %s198 = scalar_lea.vmem %s1, %s197
        %p199 = pneg %p63
        %p200 = pneg %p60
        %p201 = pneg %p84
        %p202 = pneg %p81
        %p203 = pneg %p105
        %p204 = pneg %p102
        %p205 = pneg %p131
        %p206 = pneg %p128
        %p207 = scmp.lt.s32.totalorder %s16, 1
        %s208 = scalar_select %p207, %s16, 1
        %s209 = smul.addr %s208, 8
        %s210 = scalar_lea.vmem %s4, %s209
        %p211 = scmp.lt.s32.totalorder %s16, 1
        %s212 = scalar_select %p211, %s16, 1
        %s213 = smul.addr %s212, 8
        %s214 = scalar_lea.vmem %s0, %s213
        %p215 = scmp.lt.s32.totalorder %s16, 1
        %s216 = scalar_select %p215, %s16, 1
        %s217 = scalar_lea.vmem %s1, %s216
        %p218 = scmp.lt.s32.totalorder %s16, 1
        %s219 = scalar_select %p218, %s16, 1
        %s220 = smul.addr %s219, 8
        %s221 = scalar_lea.vmem %s4, %s220
        %v223 = vld [vmem:[%s214] sm:$0xff]
        %v224 = vld [vmem:[%s3] ss:$0 sm:$0xff]
        %v225 = vld [vmem:[%s3 + $0x1] ss:$0 sm:$0xff]
        %vm226 = vcmask 130048
        %v227 = vsel %vm226, %v223, 0.0
        %228 = vadd.xlane.f32.xlu0 %v227
        %v229 = vpop.xlane.xlu0 %228
        %v230 = vrcp.pop 16.0
        %v231 = vmul.f32 %v229, %v230
        %v232 = vsub.f32 %v223, %v231
        %v233 = vmul.f32 %v232, %v232
        %v234 = vsel %vm226, %v233, 0.0
        %235 = vadd.xlane.f32.xlu0 %v234
        %v236 = vpop.xlane.xlu0 %235
        %v237 = vmul.f32 %v236, %v230
        %v238 = vadd.f32 %v237, 1e-12
        %v239 = vrsqrt.pop %v238
        %v240 = vmul.f32 %v232, %v239
        %v241 = vmul.f32 %v240, %v224
        %v242 = vadd.f32 %v241, %v225
        %v243 = vld [vmem:[#allocation2] sm:$0xf]
        %v244 = vld [vmem:[#allocation2 + $0xc] sm:$0xf]
        %v245 = vpack.c.bf16 %v242, %v242
        %v246 = vld [vmem:[%s3 + $0x2] ss:$0 sm:$0xff]
        %v249 = vunpack.c.l.b16 %v243
        %v250 = vunpack.c.l.b16 %v244
        %v251 = vpack.c.b16 %v250, %v249
        %v254 = vsel %vm226, %v245, 0
        %256 = vmatprep.subr.bf16.mxu0 0
        %257 = vmatpush1.bf16.msra.mxu0 %v251
        %258 = vmatprep.subr.bf16.mxu0 0
        %259 = vmatpush1.bf16.msra.mxu0 0
        %260 = vmatprep.subr.bf16.mxu0 0
        %261 = vmatpush1.bf16.msra.mxu0 0
        %262 = vmatprep.subr.bf16.mxu0 0
        %263 = vmatpush1.bf16.msra.mxu0 0
        %264 = vmatprep.subr.bf16.mxu0 0
        %265 = vmatpush1.bf16.msra.mxu0 0
        %266 = vmatprep.subr.bf16.mxu0 0
        %267 = vmatpush1.bf16.msra.mxu0 0
        %268 = vmatprep.subr.bf16.mxu0 0
        %269 = vmatpush1.bf16.msra.mxu0 0
        %270 = vmatprep.subr.bf16.mxu0 0
        %271 = vmatpush1.bf16.msra.mxu0 0
        %272 = vmatprep.subr.bf16.mxu0 0
        %273 = vmatpush1.bf16.msra.mxu0 0
        %274 = vmatprep.subr.bf16.mxu0 0
        %275 = vmatpush1.bf16.msra.mxu0 0
        %276 = vmatprep.subr.bf16.mxu0 0
        %277 = vmatpush1.bf16.msra.mxu0 0
        %278 = vmatprep.subr.bf16.mxu0 0
        %279 = vmatpush1.bf16.msra.mxu0 0
        %280 = vmatprep.subr.bf16.mxu0 0
        %281 = vmatpush1.bf16.msra.mxu0 0
        %282 = vmatprep.subr.bf16.mxu0 0
        %283 = vmatpush1.bf16.msra.mxu0 0
        %284 = vmatprep.subr.bf16.mxu0 0
        %285 = vmatpush1.bf16.msra.mxu0 0
        %286 = vmatprep.subr.bf16.mxu0 0
        %287 = vmatpush1.bf16.msra.mxu0 0
        %288 = vmatprep.mubr.bf16.mxu0 0
        %289 = vmatmul.mubr.bf16.gmra.mrb[0].mxu0 %v254
        %v290 = vpop.f32.mrb[0].mxu0
        %v291 = vadd.f32 %v246, %v290
        %v292 = vpop.f32.mrb[0].mxu0
        %v293 = vpop.f32.mrb[0].mxu0
        %v294 = vpop.f32.mrb[0].mxu0
        %295 = vdwg.mxu0
        %v296 = vld [vmem:[#allocation2 + $0x18] sm:$0xff]
        %v297 = vld [vmem:[#allocation2 + $0x20] sm:$0xf]
        %v298 = vld [vmem:[#allocation2 + $0x24] sm:$0xff]
        %v299 = vld [vmem:[#allocation2 + $0x2c] sm:$0xf]
        %v300 = vld [vmem:[#allocation2 + $0x30] sm:$0xff]
        %v301 = vld [vmem:[#allocation2 + $0x38] sm:$0xf]
        %v302 = vld [vmem:[#allocation2 + $0x3c] sm:$0xff]
        %v303 = vld [vmem:[#allocation2 + $0x44] sm:$0xf]
        %v304 = vld [vmem:[#allocation2 + $0x48] sm:$0xf]
        %v305 = vld [vmem:[#allocation2 + $0x54] sm:$0xf]
        %v306 = vld [vmem:[#allocation2 + $0x60] sm:$0xf]
        %v307 = vld [vmem:[#allocation2 + $0x6c] sm:$0xf]
        %v308 = vld [vmem:[#allocation2 + $0x78] sm:$0xf]
        %v309 = vld [vmem:[#allocation2 + $0x84] sm:$0xf]
        %v310 = vld [vmem:[#allocation2 + $0x90] sm:$0xf]
        %v311 = vld [vmem:[#allocation2 + $0x9c] sm:$0xf]
        %v312 = vld [vmem:[#allocation2 + $0xa8] sm:$0xf]
        %v313 = vld [vmem:[#allocation2 + $0xb4] sm:$0xf]
        %v314 = vld [vmem:[#allocation2 + $0xc0] sm:$0xf]
        %v315 = vld [vmem:[#allocation2 + $0xcc] sm:$0xf]
        %v316 = vld [vmem:[#allocation2 + $0xd8] sm:$0xf]
        %v317 = vld [vmem:[#allocation2 + $0xe4] sm:$0xf]
        %v318 = vld [vmem:[#allocation2 + $0xf0] sm:$0xf]
        %v319 = vld [vmem:[#allocation2 + $0xfc] sm:$0xf]
        %v320 = vld [vmem:[#allocation2 + $0x108] sm:$0xf]
        %v321 = vld [vmem:[#allocation2 + $0x114] sm:$0xf]
        %v322 = vld [vmem:[#allocation2 + $0x120] sm:$0xf]
        %v323 = vld [vmem:[#allocation2 + $0x12c] sm:$0xf]
        %v324 = vld [vmem:[#allocation2 + $0x138] sm:$0xf]
        %v325 = vld [vmem:[#allocation2 + $0x144] sm:$0xf]
        %v326 = vld [vmem:[#allocation2 + $0x150] sm:$0xf]
        %v327 = vld [vmem:[#allocation2 + $0x15c] sm:$0xf]
        %v328 = vld [vmem:[#allocation2 + $0x168] sm:$0xf]
        %v329 = vld [vmem:[#allocation2 + $0x174] sm:$0xf]
        %v330 = vld [vmem:[#allocation2 + $0x180] sm:$0xf]
        %v331 = vld [vmem:[#allocation2 + $0x18c] sm:$0xf]
        %s332 = scalar_lea.vmem %s3, 3
        %v333 = vld [vmem:[%s332] ss:$8 sm:$0x7]
        %v335 = vlaneseq
        %v336 = vshrl.u32 %v335, 7
        %v337 = vsub.s32 0, %v336
        %v338 = vrot.slane %v333, %v337
        %v339 = vlaneseq
        %v340 = vshrl.u32 %v339, 7
        %v341 = vsub.s32 1, %v340
        %v342 = vrot.slane %v333, %v341
        %v343 = vlaneseq
        %v344 = vshrl.u32 %v343, 7
        %v345 = vsub.s32 2, %v344
        %v346 = vrot.slane %v333, %v345
        %v350 = vld [vmem:[%s3 + $0x4] ss:$0 sm:$0xff]
        %v351 = vld [vmem:[%s3 + $0x5] ss:$0 sm:$0xff]
        %v352 = vld [vmem:[%s3 + $0x6] ss:$0 sm:$0xff]
        %v353 = vld [vmem:[%s3 + $0x7] ss:$0 sm:$0xff]
        %v354 = vld [vmem:[%s3 + $0x18] ss:$0 sm:$0xff]
        %v355 = vld [vmem:[%s3 + $0x19] ss:$0 sm:$0xff]
        %v356 = vld [vmem:[%s3 + $0x1a] ss:$0 sm:$0xff]
        %v357 = vld [vmem:[%s217] sm:$0x1]
        %vm358 = vcmp.gt.f32.partialorder %v357, 0.0
        %v359 = vsel %vm358, 0.0, -1e+09
        %v361 = vlaneseq
        %v362 = vshrl.u32 %v361, 7
        %v363 = vsub.s32 0, %v362
        %v364 = vrot.slane %v359, %v363
        %v366 = vlaneseq
        %v367 = vand.u32 %v366, 127
        %vm368 = vcmp.ge.s32.totalorder %v367, 0
        %vm369 = vcmp.ge.s32.totalorder %v367, 8
        %vm370 = vcmp.ge.s32.totalorder %v367, 16
        %vm371 = vcmp.ge.s32.totalorder %v367, 24
        %vm372 = vcmp.lt.s32.totalorder %v367, 8
        %vm373 = vcmp.lt.s32.totalorder %v367, 16
        %vm374 = vcmp.lt.s32.totalorder %v367, 24
        %vm375 = vcmp.lt.s32.totalorder %v367, 32
        %vm376 = vmand %vm368, %vm372
        %vm377 = vmand %vm369, %vm373
        %vm378 = vmand %vm370, %vm374
        %vm379 = vmand %vm371, %vm375
        %v380 = vsel %vm376, 1.0, 0.0
        %v381 = vsel %vm377, 1.0, 0.0
        %v382 = vsel %vm378, 1.0, 0.0
        %v383 = vsel %vm379, 1.0, 0.0
        %v384 = vpack.c.bf16 %v291, %v291
        %v393 = vunpack.c.l.b16 %v296
        %v394 = vunpack.c.h.b16 %v296
        %v395 = vunpack.c.l.b16 %v297
        %v396 = vunpack.c.l.b16 %v298
        %v397 = vunpack.c.h.b16 %v298
        %v398 = vunpack.c.l.b16 %v299
        %v399 = vunpack.c.l.b16 %v300
        %v400 = vunpack.c.h.b16 %v300
        %v401 = vunpack.c.l.b16 %v301
        %v402 = vunpack.c.l.b16 %v302
        %v403 = vunpack.c.h.b16 %v302
        %v404 = vunpack.c.l.b16 %v303
        %v405 = vpack.c.b16 %v396, %v393
        %v406 = vpack.c.b16 %v397, %v394
        %v407 = vpack.c.b16 %v398, %v395
        %v408 = vpack.c.b16 %v402, %v399
        %v409 = vpack.c.b16 %v403, %v400
        %v410 = vpack.c.b16 %v404, %v401
        %vm417 = vcmask 261120
        %v419 = vsel %vm417, %v384, 0
        %421 = vmatprep.subr.bf16.mxu0 %v406
        %422 = vmatpush1.bf16.msra.mxu0 %v405
        %423 = vmatprep.subr.bf16.mxu0 %v409
        %424 = vmatpush1.bf16.msra.mxu0 %v408
        %425 = vmatprep.subr.bf16.mxu0 0
        %426 = vmatpush1.bf16.msra.mxu0 0
        %427 = vmatprep.subr.bf16.mxu0 0
        %428 = vmatpush1.bf16.msra.mxu0 0
        %429 = vmatprep.subr.bf16.mxu0 0
        %430 = vmatpush1.bf16.msra.mxu0 0
        %431 = vmatprep.subr.bf16.mxu0 0
        %432 = vmatpush1.bf16.msra.mxu0 0
        %433 = vmatprep.subr.bf16.mxu0 0
        %434 = vmatpush1.bf16.msra.mxu0 0
        %435 = vmatprep.subr.bf16.mxu0 0
        %436 = vmatpush1.bf16.msra.mxu0 0
        %437 = vmatprep.subr.bf16.mxu0 0
        %438 = vmatpush1.bf16.msra.mxu0 0
        %439 = vmatprep.subr.bf16.mxu0 0
        %440 = vmatpush1.bf16.msra.mxu0 0
        %441 = vmatprep.subr.bf16.mxu0 0
        %442 = vmatpush1.bf16.msra.mxu0 0
        %443 = vmatprep.subr.bf16.mxu0 0
        %444 = vmatpush1.bf16.msra.mxu0 0
        %445 = vmatprep.subr.bf16.mxu0 0
        %446 = vmatpush1.bf16.msra.mxu0 0
        %447 = vmatprep.subr.bf16.mxu0 0
        %448 = vmatpush1.bf16.msra.mxu0 0
        %449 = vmatprep.subr.bf16.mxu0 0
        %450 = vmatpush1.bf16.msra.mxu0 0
        %451 = vmatprep.subr.bf16.mxu0 0
        %452 = vmatpush1.bf16.msra.mxu0 0
        %453 = vmatprep.mubr.bf16.mxu0 0
        %454 = vmatmul.mubr.bf16.gmra.mrb[0].mxu0 %v419
        %v455 = vpop.f32.mrb[0].mxu0
        %v456 = vadd.f32 %v338, %v455
        %v457 = vpop.f32.mrb[0].mxu0
        %v458 = vadd.f32 %v342, %v457
        %v459 = vpop.f32.mrb[0].mxu0
        %v460 = vpop.f32.mrb[0].mxu0
        %461 = vdwg.mxu0
        %462 = vmatprep.subr.bf16.mxu0 0
        %463 = vmatpush1.bf16.msra.mxu0 %v407
        %464 = vmatprep.subr.bf16.mxu0 0
        %465 = vmatpush1.bf16.msra.mxu0 %v410
        %466 = vmatprep.subr.bf16.mxu0 0
        %467 = vmatpush1.bf16.msra.mxu0 0
        %468 = vmatprep.subr.bf16.mxu0 0
        %469 = vmatpush1.bf16.msra.mxu0 0
        %470 = vmatprep.subr.bf16.mxu0 0
        %471 = vmatpush1.bf16.msra.mxu0 0
        %472 = vmatprep.subr.bf16.mxu0 0
        %473 = vmatpush1.bf16.msra.mxu0 0
        %474 = vmatprep.subr.bf16.mxu0 0
        %475 = vmatpush1.bf16.msra.mxu0 0
        %476 = vmatprep.subr.bf16.mxu0 0
        %477 = vmatpush1.bf16.msra.mxu0 0
        %478 = vmatprep.subr.bf16.mxu0 0
        %479 = vmatpush1.bf16.msra.mxu0 0
        %480 = vmatprep.subr.bf16.mxu0 0
        %481 = vmatpush1.bf16.msra.mxu0 0
        %482 = vmatprep.subr.bf16.mxu0 0
        %483 = vmatpush1.bf16.msra.mxu0 0
        %484 = vmatprep.subr.bf16.mxu0 0
        %485 = vmatpush1.bf16.msra.mxu0 0
        %486 = vmatprep.subr.bf16.mxu0 0
        %487 = vmatpush1.bf16.msra.mxu0 0
        %488 = vmatprep.subr.bf16.mxu0 0
        %489 = vmatpush1.bf16.msra.mxu0 0
        %490 = vmatprep.subr.bf16.mxu0 0
        %491 = vmatpush1.bf16.msra.mxu0 0
        %492 = vmatprep.subr.bf16.mxu0 0
        %493 = vmatpush1.bf16.msra.mxu0 0
        %494 = vmatprep.mubr.bf16.mxu0 0
        %495 = vmatmul.mubr.bf16.gmra.mrb[0].mxu0 %v419
        %v496 = vpop.f32.mrb[0].mxu0
        %v497 = vadd.f32 %v346, %v496
        %v498 = vpop.f32.mrb[0].mxu0
        %v499 = vpop.f32.mrb[0].mxu0
        %v500 = vpop.f32.mrb[0].mxu0
        %501 = vdwg.mxu0
        %v502 = vmul.f32 %v456, %v380
        %v503 = vmul.f32 %v456, %v381
        %v504 = vmul.f32 %v456, %v382
        %v505 = vmul.f32 %v456, %v383
        %v506 = vpack.c.bf16 %v503, %v502
        %v507 = vpack.c.bf16 %v505, %v504
        %v508 = vpack.c.bf16 %v458, %v458
        %509 = vmatprep.subr.bf16.mxu0 0
        %510 = vmatpush1.bf16.xpose.msra.mxu0 %v508
        %511 = vmatprep.subr.bf16.mxu0 0
        %512 = vmatpush1.bf16.xpose.msra.mxu0 0
        %513 = vmatprep.subr.bf16.mxu0 0
        %514 = vmatpush1.bf16.xpose.msra.mxu0 0
        %515 = vmatprep.subr.bf16.mxu0 0
        %516 = vmatpush1.bf16.xpose.msra.mxu0 0
        %517 = vmatprep.subr.bf16.mxu0 0
        %518 = vmatpush1.bf16.xpose.msra.mxu0 0
        %519 = vmatprep.subr.bf16.mxu0 0
        %520 = vmatpush1.bf16.xpose.msra.mxu0 0
        %521 = vmatprep.subr.bf16.mxu0 0
        %522 = vmatpush1.bf16.xpose.msra.mxu0 0
        %523 = vmatprep.subr.bf16.mxu0 0
        %524 = vmatpush1.bf16.xpose.msra.mxu0 0
        %525 = vmatprep.subr.bf16.mxu0 0
        %526 = vmatpush1.bf16.xpose.msra.mxu0 0
        %527 = vmatprep.subr.bf16.mxu0 0
        %528 = vmatpush1.bf16.xpose.msra.mxu0 0
        %529 = vmatprep.subr.bf16.mxu0 0
        %530 = vmatpush1.bf16.xpose.msra.mxu0 0
        %531 = vmatprep.subr.bf16.mxu0 0
        %532 = vmatpush1.bf16.xpose.msra.mxu0 0
        %533 = vmatprep.subr.bf16.mxu0 0
        %534 = vmatpush1.bf16.xpose.msra.mxu0 0
        %535 = vmatprep.subr.bf16.mxu0 0
        %536 = vmatpush1.bf16.xpose.msra.mxu0 0
        %537 = vmatprep.subr.bf16.mxu0 0
        %538 = vmatpush1.bf16.xpose.msra.mxu0 0
        %539 = vmatprep.subr.bf16.mxu0 0
        %540 = vmatpush1.bf16.xpose.msra.mxu0 0
        %541 = vmatprep.mubr.bf16.mxu0 0
        %542 = vmatmul.mubr.bf16.gmra.mrb[0].mxu0 %v506
        %v543 = vpop.f32.mrb[0].mxu0
        %v544 = vadd.f32 %v364, %v543
        %v545 = vpop.f32.mrb[0].mxu0
        %v546 = vpop.f32.mrb[0].mxu0
        %v547 = vadd.f32 %v364, %v546
        %v548 = vpop.f32.mrb[0].mxu0
        %549 = vmatprep.mubr.bf16.mxu0 0
        %550 = vmatmul.mubr.bf16.gmra.mrb[0].mxu0 %v507
        %v551 = vpop.f32.mrb[0].mxu0
        %v552 = vadd.f32 %v364, %v551
        %v553 = vpop.f32.mrb[0].mxu0
        %v554 = vpop.f32.mrb[0].mxu0
        %v555 = vadd.f32 %v364, %v554
        %v556 = vpop.f32.mrb[0].mxu0
        %557 = vdwg.mxu0
        %vm558 = vcmask 64512
        %v559 = vsel %vm558, %v544, -inf
        %560 = vmax.xlane.f32.xlu0 %v559
        %v561 = vpop.xlane.xlu0 %560
        %v562 = vsel %vm558, %v547, -inf
        %563 = vmax.xlane.f32.xlu0 %v562
        %v564 = vpop.xlane.xlu0 %563
        %v565 = vsel %vm558, %v552, -inf
        %566 = vmax.xlane.f32.xlu0 %v565
        %v567 = vpop.xlane.xlu0 %566
        %v568 = vsel %vm558, %v555, -inf
        %569 = vmax.xlane.f32.xlu0 %v568
        %v570 = vpop.xlane.xlu0 %569
        %v571 = vsub.f32 %v544, %v561
        %v572 = vsub.f32 %v547, %v564
        %v573 = vsub.f32 %v552, %v567
        %v574 = vsub.f32 %v555, %v570
        %v575 = vmul.f32 %v571, 1.442695
        %v576 = vpow.pop %v575
        %v577 = vmul.f32 %v572, 1.442695
        %v578 = vpow.pop %v577
        %v579 = vmul.f32 %v573, 1.442695
        %v580 = vpow.pop %v579
        %v581 = vmul.f32 %v574, 1.442695
        %v582 = vpow.pop %v581
        %v583 = vsel %vm558, %v576, 0.0
        %584 = vadd.xlane.f32.xlu0 %v583
        %v585 = vpop.xlane.xlu0 %584
        %v586 = vsel %vm558, %v578, 0.0
        %587 = vadd.xlane.f32.xlu0 %v586
        %v588 = vpop.xlane.xlu0 %587
        %v589 = vsel %vm558, %v580, 0.0
        %590 = vadd.xlane.f32.xlu0 %v589
        %v591 = vpop.xlane.xlu0 %590
        %v592 = vsel %vm558, %v582, 0.0
        %593 = vadd.xlane.f32.xlu0 %v592
        %v594 = vpop.xlane.xlu0 %593
        %v595 = vrcp.pop %v585
        %v596 = vrcp.pop %v588
        %v597 = vrcp.pop %v591
        %v598 = vrcp.pop %v594
        %v599 = vmul.f32 %v576, %v595
        %v600 = vmul.f32 %v578, %v596
        %v601 = vmul.f32 %v580, %v597
        %v602 = vmul.f32 %v582, %v598
        %v603 = vpack.c.bf16 %v600, %v599
        %v604 = vpack.c.bf16 %v602, %v601
        %v605 = vpack.c.bf16 %v497, %v497
        %v607 = vsel %vm558, %v603, 0
        %v610 = vsel %vm558, %v604, 0
        %vm612 = vcmask 1043456
        %v614 = vsel %vm612, %v605, 0
        %616 = vmatprep.subr.bf16.mxu0 0
        %617 = vmatpush1.bf16.msra.mxu0 %v614
        %618 = vmatprep.subr.bf16.mxu0 0
        %619 = vmatpush1.bf16.msra.mxu0 0
        %620 = vmatprep.subr.bf16.mxu0 0
        %621 = vmatpush1.bf16.msra.mxu0 0
        %622 = vmatprep.subr.bf16.mxu0 0
        %623 = vmatpush1.bf16.msra.mxu0 0
        %624 = vmatprep.subr.bf16.mxu0 0
        %625 = vmatpush1.bf16.msra.mxu0 0
        %626 = vmatprep.subr.bf16.mxu0 0
        %627 = vmatpush1.bf16.msra.mxu0 0
        %628 = vmatprep.subr.bf16.mxu0 0
        %629 = vmatpush1.bf16.msra.mxu0 0
        %630 = vmatprep.subr.bf16.mxu0 0
        %631 = vmatpush1.bf16.msra.mxu0 0
        %632 = vmatprep.subr.bf16.mxu0 0
        %633 = vmatpush1.bf16.msra.mxu0 0
        %634 = vmatprep.subr.bf16.mxu0 0
        %635 = vmatpush1.bf16.msra.mxu0 0
        %636 = vmatprep.subr.bf16.mxu0 0
        %637 = vmatpush1.bf16.msra.mxu0 0
        %638 = vmatprep.subr.bf16.mxu0 0
        %639 = vmatpush1.bf16.msra.mxu0 0
        %640 = vmatprep.subr.bf16.mxu0 0
        %641 = vmatpush1.bf16.msra.mxu0 0
        %642 = vmatprep.subr.bf16.mxu0 0
        %643 = vmatpush1.bf16.msra.mxu0 0
        %644 = vmatprep.subr.bf16.mxu0 0
        %645 = vmatpush1.bf16.msra.mxu0 0
        %646 = vmatprep.subr.bf16.mxu0 0
        %647 = vmatpush1.bf16.msra.mxu0 0
        %648 = vmatprep.mubr.bf16.mxu0 0
        %649 = vmatmul.mubr.bf16.gmra.mrb[0].mxu0 %v607
        %v650 = vpop.f32.mrb[0].mxu0
        %v651 = vadd.f32 0.0, %v650
        %v652 = vpop.f32.mrb[0].mxu0
        %v653 = vpop.f32.mrb[0].mxu0
        %v654 = vadd.f32 0.0, %v653
        %v655 = vpop.f32.mrb[0].mxu0
        %656 = vmatprep.mubr.bf16.mxu0 0
        %657 = vmatmul.mubr.bf16.gmra.mrb[0].mxu0 %v610
        %v658 = vpop.f32.mrb[0].mxu0
        %v659 = vadd.f32 0.0, %v658
        %v660 = vpop.f32.mrb[0].mxu0
        %v661 = vpop.f32.mrb[0].mxu0
        %v662 = vadd.f32 0.0, %v661
        %v663 = vpop.f32.mrb[0].mxu0
        %664 = vdwg.mxu0
        %v665 = vmul.f32 %v651, %v380
        %v666 = vmul.f32 %v654, %v381
        %v667 = vmul.f32 %v659, %v382
        %v668 = vmul.f32 %v662, %v383
        %v669 = vadd.f32 %v665, %v666
        %v670 = vadd.f32 %v669, %v667
        %v671 = vadd.f32 %v670, %v668
        %v672 = vpack.c.bf16 %v671, %v671
        %v689 = vunpack.c.l.b16 %v304
        %v690 = vunpack.c.l.b16 %v305
        %v691 = vunpack.c.l.b16 %v306
        %v692 = vunpack.c.l.b16 %v307
        %v693 = vunpack.c.l.b16 %v308
        %v694 = vunpack.c.l.b16 %v309
        %v695 = vunpack.c.l.b16 %v310
        %v696 = vunpack.c.l.b16 %v311
        %v697 = vunpack.c.l.b16 %v312
        %v698 = vunpack.c.l.b16 %v313
        %v699 = vunpack.c.l.b16 %v314
        %v700 = vunpack.c.l.b16 %v315
        %v701 = vunpack.c.l.b16 %v316
        %v702 = vunpack.c.l.b16 %v317
        %v703 = vunpack.c.l.b16 %v318
        %v704 = vunpack.c.l.b16 %v319
        %v705 = vpack.c.b16 %v690, %v689
        %v706 = vpack.c.b16 %v692, %v691
        %v707 = vpack.c.b16 %v694, %v693
        %v708 = vpack.c.b16 %v696, %v695
        %v709 = vpack.c.b16 %v698, %v697
        %v710 = vpack.c.b16 %v700, %v699
        %v711 = vpack.c.b16 %v702, %v701
        %v712 = vpack.c.b16 %v704, %v703
        %721 = vmatprep.subr.bf16.mxu0 0
        %722 = vmatpush1.bf16.msra.mxu0 %v705
        %723 = vmatprep.subr.bf16.mxu0 0
        %724 = vmatpush1.bf16.msra.mxu0 %v706
        %725 = vmatprep.subr.bf16.mxu0 0
        %726 = vmatpush1.bf16.msra.mxu0 %v707
        %727 = vmatprep.subr.bf16.mxu0 0
        %728 = vmatpush1.bf16.msra.mxu0 %v708
        %729 = vmatprep.subr.bf16.mxu0 0
        %730 = vmatpush1.bf16.msra.mxu0 %v709
        %731 = vmatprep.subr.bf16.mxu0 0
        %732 = vmatpush1.bf16.msra.mxu0 %v710
        %733 = vmatprep.subr.bf16.mxu0 0
        %734 = vmatpush1.bf16.msra.mxu0 %v711
        %735 = vmatprep.subr.bf16.mxu0 0
        %736 = vmatpush1.bf16.msra.mxu0 %v712
        %737 = vmatprep.subr.bf16.mxu0 0
        %738 = vmatpush1.bf16.msra.mxu0 0
        %739 = vmatprep.subr.bf16.mxu0 0
        %740 = vmatpush1.bf16.msra.mxu0 0
        %741 = vmatprep.subr.bf16.mxu0 0
        %742 = vmatpush1.bf16.msra.mxu0 0
        %743 = vmatprep.subr.bf16.mxu0 0
        %744 = vmatpush1.bf16.msra.mxu0 0
        %745 = vmatprep.subr.bf16.mxu0 0
        %746 = vmatpush1.bf16.msra.mxu0 0
        %747 = vmatprep.subr.bf16.mxu0 0
        %748 = vmatpush1.bf16.msra.mxu0 0
        %749 = vmatprep.subr.bf16.mxu0 0
        %750 = vmatpush1.bf16.msra.mxu0 0
        %751 = vmatprep.subr.bf16.mxu0 0
        %752 = vmatpush1.bf16.msra.mxu0 0
        %753 = vmatprep.mubr.bf16.mxu0 0
        %754 = vmatmul.mubr.bf16.gmra.mrb[0].mxu0 %v672
        %v755 = vpop.f32.mrb[0].mxu0
        %v756 = vadd.f32 %v350, %v755
        %v757 = vpop.f32.mrb[0].mxu0
        %v758 = vpop.f32.mrb[0].mxu0
        %v759 = vpop.f32.mrb[0].mxu0
        %760 = vdwg.mxu0
        %v761 = vadd.f32 %v291, %v756
        %v762 = vsel %vm417, %v761, 0.0
        %763 = vadd.xlane.f32.xlu0 %v762
        %v764 = vpop.xlane.xlu0 %763
        %v765 = vrcp.pop 32.0
        %v766 = vmul.f32 %v764, %v765
        %v767 = vsub.f32 %v761, %v766
        %v768 = vmul.f32 %v767, %v767
        %v769 = vsel %vm417, %v768, 0.0
        %770 = vadd.xlane.f32.xlu0 %v769
        %v771 = vpop.xlane.xlu0 %770
        %v772 = vmul.f32 %v771, %v765
        %v773 = vadd.f32 %v772, 1e-12
        %v774 = vrsqrt.pop %v773
        %v775 = vmul.f32 %v767, %v774
        %v776 = vmul.f32 %v775, %v351
        %v777 = vadd.f32 %v776, %v352
        %v778 = vpack.c.bf16 %v777, %v777
        %v783 = vunpack.c.l.b16 %v320
        %v784 = vunpack.c.l.b16 %v321
        %v785 = vunpack.c.l.b16 %v322
        %v786 = vunpack.c.l.b16 %v323
        %v787 = vpack.c.b16 %v784, %v783
        %v788 = vpack.c.b16 %v786, %v785
        %v792 = vsel %vm417, %v778, 0
        %794 = vmatprep.subr.bf16.mxu0 0
        %795 = vmatpush1.bf16.msra.mxu0 %v787
        %796 = vmatprep.subr.bf16.mxu0 0
        %797 = vmatpush1.bf16.msra.mxu0 %v788
        %798 = vmatprep.subr.bf16.mxu0 0
        %799 = vmatpush1.bf16.msra.mxu0 0
        %800 = vmatprep.subr.bf16.mxu0 0
        %801 = vmatpush1.bf16.msra.mxu0 0
        %802 = vmatprep.subr.bf16.mxu0 0
        %803 = vmatpush1.bf16.msra.mxu0 0
        %804 = vmatprep.subr.bf16.mxu0 0
        %805 = vmatpush1.bf16.msra.mxu0 0
        %806 = vmatprep.subr.bf16.mxu0 0
        %807 = vmatpush1.bf16.msra.mxu0 0
        %808 = vmatprep.subr.bf16.mxu0 0
        %809 = vmatpush1.bf16.msra.mxu0 0
        %810 = vmatprep.subr.bf16.mxu0 0
        %811 = vmatpush1.bf16.msra.mxu0 0
        %812 = vmatprep.subr.bf16.mxu0 0
        %813 = vmatpush1.bf16.msra.mxu0 0
        %814 = vmatprep.subr.bf16.mxu0 0
        %815 = vmatpush1.bf16.msra.mxu0 0
        %816 = vmatprep.subr.bf16.mxu0 0
        %817 = vmatpush1.bf16.msra.mxu0 0
        %818 = vmatprep.subr.bf16.mxu0 0
        %819 = vmatpush1.bf16.msra.mxu0 0
        %820 = vmatprep.subr.bf16.mxu0 0
        %821 = vmatpush1.bf16.msra.mxu0 0
        %822 = vmatprep.subr.bf16.mxu0 0
        %823 = vmatpush1.bf16.msra.mxu0 0
        %824 = vmatprep.subr.bf16.mxu0 0
        %825 = vmatpush1.bf16.msra.mxu0 0
        %826 = vmatprep.mubr.bf16.mxu0 0
        %827 = vmatmul.mubr.bf16.gmra.mrb[0].mxu0 %v792
        %v828 = vpop.f32.mrb[0].mxu0
        %v829 = vadd.f32 %v353, %v828
        %v830 = vpop.f32.mrb[0].mxu0
        %v831 = vpop.f32.mrb[0].mxu0
        %v832 = vpop.f32.mrb[0].mxu0
        %833 = vdwg.mxu0
        %v834 = vmul.f32 %v829, 0.5
        %v835 = vmul.f32 %v829, 0.044715
        %v836 = vmul.f32 %v835, %v829
        %v837 = vmul.f32 %v836, %v829
        %v838 = vadd.f32 %v829, %v837
        %v839 = vmul.f32 %v838, 0.7978846
        %v840 = vtanh.pop %v839
        %v841 = vadd.f32 %v840, 1.0
        %v842 = vmul.f32 %v834, %v841
        %v843 = vpack.c.bf16 %v842, %v842
        %v852 = vunpack.c.l.b16 %v324
        %v853 = vunpack.c.l.b16 %v325
        %v854 = vunpack.c.l.b16 %v326
        %v855 = vunpack.c.l.b16 %v327
        %v856 = vunpack.c.l.b16 %v328
        %v857 = vunpack.c.l.b16 %v329
        %v858 = vunpack.c.l.b16 %v330
        %v859 = vunpack.c.l.b16 %v331
        %v860 = vpack.c.b16 %v853, %v852
        %v861 = vpack.c.b16 %v855, %v854
        %v862 = vpack.c.b16 %v857, %v856
        %v863 = vpack.c.b16 %v859, %v858
        %vm868 = vcmask 523264
        %v870 = vsel %vm868, %v843, 0
        %872 = vmatprep.subr.bf16.mxu0 0
        %873 = vmatpush1.bf16.msra.mxu0 %v860
        %874 = vmatprep.subr.bf16.mxu0 0
        %875 = vmatpush1.bf16.msra.mxu0 %v861
        %876 = vmatprep.subr.bf16.mxu0 0
        %877 = vmatpush1.bf16.msra.mxu0 %v862
        %878 = vmatprep.subr.bf16.mxu0 0
        %879 = vmatpush1.bf16.msra.mxu0 %v863
        %880 = vmatprep.subr.bf16.mxu0 0
        %881 = vmatpush1.bf16.msra.mxu0 0
        %882 = vmatprep.subr.bf16.mxu0 0
        %883 = vmatpush1.bf16.msra.mxu0 0
        %884 = vmatprep.subr.bf16.mxu0 0
        %885 = vmatpush1.bf16.msra.mxu0 0
        %886 = vmatprep.subr.bf16.mxu0 0
        %887 = vmatpush1.bf16.msra.mxu0 0
        %888 = vmatprep.subr.bf16.mxu0 0
        %889 = vmatpush1.bf16.msra.mxu0 0
        %890 = vmatprep.subr.bf16.mxu0 0
        %891 = vmatpush1.bf16.msra.mxu0 0
        %892 = vmatprep.subr.bf16.mxu0 0
        %893 = vmatpush1.bf16.msra.mxu0 0
        %894 = vmatprep.subr.bf16.mxu0 0
        %895 = vmatpush1.bf16.msra.mxu0 0
        %896 = vmatprep.subr.bf16.mxu0 0
        %897 = vmatpush1.bf16.msra.mxu0 0
        %898 = vmatprep.subr.bf16.mxu0 0
        %899 = vmatpush1.bf16.msra.mxu0 0
        %900 = vmatprep.subr.bf16.mxu0 0
        %901 = vmatpush1.bf16.msra.mxu0 0
        %902 = vmatprep.subr.bf16.mxu0 0
        %903 = vmatpush1.bf16.msra.mxu0 0
        %904 = vmatprep.mubr.bf16.mxu0 0
        %905 = vmatmul.mubr.bf16.gmra.mrb[0].mxu0 %v870
        %v906 = vpop.f32.mrb[0].mxu0
        %v907 = vadd.f32 %v354, %v906
        %v908 = vpop.f32.mrb[0].mxu0
        %v909 = vpop.f32.mrb[0].mxu0
        %v910 = vpop.f32.mrb[0].mxu0
        %911 = vdwg.mxu0
        %v912 = vadd.f32 %v907, %v777
        %v913 = vsel %vm417, %v912, 0.0
        %914 = vadd.xlane.f32.xlu0 %v913
        %v915 = vpop.xlane.xlu0 %914
        %v916 = vmul.f32 %v915, %v765
        %v917 = vsub.f32 %v912, %v916
        %v918 = vmul.f32 %v917, %v917
        %v919 = vsel %vm417, %v918, 0.0
        %920 = vadd.xlane.f32.xlu0 %v919
        %v921 = vpop.xlane.xlu0 %920
        %v922 = vmul.f32 %v921, %v765
        %v923 = vadd.f32 %v922, 1e-12
        %v924 = vrsqrt.pop %v923
        %v925 = vmul.f32 %v917, %v924
        %v926 = vmul.f32 %v925, %v355
        %v927 = vadd.f32 %v926, %v356
        %v928 = vpack.c.bf16 %v927, %v927
        %v930 = vsel %vm417, %v928, 0
        %932 = vmatprep.subr.bf16.mxu0 %v406
        %933 = vmatpush1.bf16.msra.mxu0 %v405
        %934 = vmatprep.subr.bf16.mxu0 %v409
        %935 = vmatpush1.bf16.msra.mxu0 %v408
        %936 = vmatprep.subr.bf16.mxu0 0
        %937 = vmatpush1.bf16.msra.mxu0 0
        %938 = vmatprep.subr.bf16.mxu0 0
        %939 = vmatpush1.bf16.msra.mxu0 0
        %940 = vmatprep.subr.bf16.mxu0 0
        %941 = vmatpush1.bf16.msra.mxu0 0
        %942 = vmatprep.subr.bf16.mxu0 0
        %943 = vmatpush1.bf16.msra.mxu0 0
        %944 = vmatprep.subr.bf16.mxu0 0
        %945 = vmatpush1.bf16.msra.mxu0 0
        %946 = vmatprep.subr.bf16.mxu0 0
        %947 = vmatpush1.bf16.msra.mxu0 0
        %948 = vmatprep.subr.bf16.mxu0 0
        %949 = vmatpush1.bf16.msra.mxu0 0
        %950 = vmatprep.subr.bf16.mxu0 0
        %951 = vmatpush1.bf16.msra.mxu0 0
        %952 = vmatprep.subr.bf16.mxu0 0
        %953 = vmatpush1.bf16.msra.mxu0 0
        %954 = vmatprep.subr.bf16.mxu0 0
        %955 = vmatpush1.bf16.msra.mxu0 0
        %956 = vmatprep.subr.bf16.mxu0 0
        %957 = vmatpush1.bf16.msra.mxu0 0
        %958 = vmatprep.subr.bf16.mxu0 0
        %959 = vmatpush1.bf16.msra.mxu0 0
        %960 = vmatprep.subr.bf16.mxu0 0
        %961 = vmatpush1.bf16.msra.mxu0 0
        %962 = vmatprep.subr.bf16.mxu0 0
        %963 = vmatpush1.bf16.msra.mxu0 0
        %964 = vmatprep.mubr.bf16.mxu0 0
        %965 = vmatmul.mubr.bf16.gmra.mrb[0].mxu0 %v930
        %v966 = vpop.f32.mrb[0].mxu0
        %v967 = vadd.f32 %v338, %v966
        %v968 = vpop.f32.mrb[0].mxu0
        %v969 = vadd.f32 %v342, %v968
        %v970 = vpop.f32.mrb[0].mxu0
        %v971 = vpop.f32.mrb[0].mxu0
        %972 = vdwg.mxu0
        %973 = vmatprep.subr.bf16.mxu0 0
        %974 = vmatpush1.bf16.msra.mxu0 %v407
        %975 = vmatprep.subr.bf16.mxu0 0
        %976 = vmatpush1.bf16.msra.mxu0 %v410
        %977 = vmatprep.subr.bf16.mxu0 0
        %978 = vmatpush1.bf16.msra.mxu0 0
        %979 = vmatprep.subr.bf16.mxu0 0
        %980 = vmatpush1.bf16.msra.mxu0 0
        %981 = vmatprep.subr.bf16.mxu0 0
        %982 = vmatpush1.bf16.msra.mxu0 0
        %983 = vmatprep.subr.bf16.mxu0 0
        %984 = vmatpush1.bf16.msra.mxu0 0
        %985 = vmatprep.subr.bf16.mxu0 0
        %986 = vmatpush1.bf16.msra.mxu0 0
        %987 = vmatprep.subr.bf16.mxu0 0
        %988 = vmatpush1.bf16.msra.mxu0 0
        %989 = vmatprep.subr.bf16.mxu0 0
        %990 = vmatpush1.bf16.msra.mxu0 0
        %991 = vmatprep.subr.bf16.mxu0 0
        %992 = vmatpush1.bf16.msra.mxu0 0
        %993 = vmatprep.subr.bf16.mxu0 0
        %994 = vmatpush1.bf16.msra.mxu0 0
        %995 = vmatprep.subr.bf16.mxu0 0
        %996 = vmatpush1.bf16.msra.mxu0 0
        %997 = vmatprep.subr.bf16.mxu0 0
        %998 = vmatpush1.bf16.msra.mxu0 0
        %999 = vmatprep.subr.bf16.mxu0 0
        %1000 = vmatpush1.bf16.msra.mxu0 0
        %1001 = vmatprep.subr.bf16.mxu0 0
        %1002 = vmatpush1.bf16.msra.mxu0 0
        %1003 = vmatprep.subr.bf16.mxu0 0
        %1004 = vmatpush1.bf16.msra.mxu0 0
        %1005 = vmatprep.mubr.bf16.mxu0 0
        %1006 = vmatmul.mubr.bf16.gmra.mrb[0].mxu0 %v930
        %v1007 = vpop.f32.mrb[0].mxu0
        %v1008 = vadd.f32 %v346, %v1007
        %v1009 = vpop.f32.mrb[0].mxu0
        %v1010 = vpop.f32.mrb[0].mxu0
        %v1011 = vpop.f32.mrb[0].mxu0
        %1012 = vdwg.mxu0
        %v1013 = vmul.f32 %v967, %v380
        %v1014 = vmul.f32 %v967, %v381
        %v1015 = vmul.f32 %v967, %v382
        %v1016 = vmul.f32 %v967, %v383
        %v1017 = vpack.c.bf16 %v1014, %v1013
        %v1018 = vpack.c.bf16 %v1016, %v1015
        %v1019 = vpack.c.bf16 %v969, %v969
        %1020 = vmatprep.subr.bf16.mxu0 0
        %1021 = vmatpush1.bf16.xpose.msra.mxu0 %v1019
        %1022 = vmatprep.subr.bf16.mxu0 0
        %1023 = vmatpush1.bf16.xpose.msra.mxu0 0
        %1024 = vmatprep.subr.bf16.mxu0 0
        %1025 = vmatpush1.bf16.xpose.msra.mxu0 0
        %1026 = vmatprep.subr.bf16.mxu0 0
        %1027 = vmatpush1.bf16.xpose.msra.mxu0 0
        %1028 = vmatprep.subr.bf16.mxu0 0
        %1029 = vmatpush1.bf16.xpose.msra.mxu0 0
        %1030 = vmatprep.subr.bf16.mxu0 0
        %1031 = vmatpush1.bf16.xpose.msra.mxu0 0
        %1032 = vmatprep.subr.bf16.mxu0 0
        %1033 = vmatpush1.bf16.xpose.msra.mxu0 0
        %1034 = vmatprep.subr.bf16.mxu0 0
        %1035 = vmatpush1.bf16.xpose.msra.mxu0 0
        %1036 = vmatprep.subr.bf16.mxu0 0
        %1037 = vmatpush1.bf16.xpose.msra.mxu0 0
        %1038 = vmatprep.subr.bf16.mxu0 0
        %1039 = vmatpush1.bf16.xpose.msra.mxu0 0
        %1040 = vmatprep.subr.bf16.mxu0 0
        %1041 = vmatpush1.bf16.xpose.msra.mxu0 0
        %1042 = vmatprep.subr.bf16.mxu0 0
        %1043 = vmatpush1.bf16.xpose.msra.mxu0 0
        %1044 = vmatprep.subr.bf16.mxu0 0
        %1045 = vmatpush1.bf16.xpose.msra.mxu0 0
        %1046 = vmatprep.subr.bf16.mxu0 0
        %1047 = vmatpush1.bf16.xpose.msra.mxu0 0
        %1048 = vmatprep.subr.bf16.mxu0 0
        %1049 = vmatpush1.bf16.xpose.msra.mxu0 0
        %1050 = vmatprep.subr.bf16.mxu0 0
        %1051 = vmatpush1.bf16.xpose.msra.mxu0 0
        %1052 = vmatprep.mubr.bf16.mxu0 0
        %1053 = vmatmul.mubr.bf16.gmra.mrb[0].mxu0 %v1017
        %v1054 = vpop.f32.mrb[0].mxu0
        %v1055 = vadd.f32 %v364, %v1054
        %v1056 = vpop.f32.mrb[0].mxu0
        %v1057 = vpop.f32.mrb[0].mxu0
        %v1058 = vadd.f32 %v364, %v1057
        %v1059 = vpop.f32.mrb[0].mxu0
        %1060 = vmatprep.mubr.bf16.mxu0 0
        %1061 = vmatmul.mubr.bf16.gmra.mrb[0].mxu0 %v1018
        %v1062 = vpop.f32.mrb[0].mxu0
        %v1063 = vadd.f32 %v364, %v1062
        %v1064 = vpop.f32.mrb[0].mxu0
        %v1065 = vpop.f32.mrb[0].mxu0
        %v1066 = vadd.f32 %v364, %v1065
        %v1067 = vpop.f32.mrb[0].mxu0
        %1068 = vdwg.mxu0
        %v1069 = vsel %vm558, %v1055, -inf
        %1070 = vmax.xlane.f32.xlu0 %v1069
        %v1071 = vpop.xlane.xlu0 %1070
        %v1072 = vsel %vm558, %v1058, -inf
        %1073 = vmax.xlane.f32.xlu0 %v1072
        %v1074 = vpop.xlane.xlu0 %1073
        %v1075 = vsel %vm558, %v1063, -inf
        %1076 = vmax.xlane.f32.xlu0 %v1075
        %v1077 = vpop.xlane.xlu0 %1076
        %v1078 = vsel %vm558, %v1066, -inf
        %1079 = vmax.xlane.f32.xlu0 %v1078
        %v1080 = vpop.xlane.xlu0 %1079
        %v1081 = vsub.f32 %v1055, %v1071
        %v1082 = vsub.f32 %v1058, %v1074
        %v1083 = vsub.f32 %v1063, %v1077
        %v1084 = vsub.f32 %v1066, %v1080
        %v1085 = vmul.f32 %v1081, 1.442695
        %v1086 = vpow.pop %v1085
        %v1087 = vmul.f32 %v1082, 1.442695
        %v1088 = vpow.pop %v1087
        %v1089 = vmul.f32 %v1083, 1.442695
        %v1090 = vpow.pop %v1089
        %v1091 = vmul.f32 %v1084, 1.442695
        %v1092 = vpow.pop %v1091
        %v1093 = vsel %vm558, %v1086, 0.0
        %1094 = vadd.xlane.f32.xlu0 %v1093
        %v1095 = vpop.xlane.xlu0 %1094
        %v1096 = vsel %vm558, %v1088, 0.0
        %1097 = vadd.xlane.f32.xlu0 %v1096
        %v1098 = vpop.xlane.xlu0 %1097
        %v1099 = vsel %vm558, %v1090, 0.0
        %1100 = vadd.xlane.f32.xlu0 %v1099
        %v1101 = vpop.xlane.xlu0 %1100
        %v1102 = vsel %vm558, %v1092, 0.0
        %1103 = vadd.xlane.f32.xlu0 %v1102
        %v1104 = vpop.xlane.xlu0 %1103
        %v1105 = vrcp.pop %v1095
        %v1106 = vrcp.pop %v1098
        %v1107 = vrcp.pop %v1101
        %v1108 = vrcp.pop %v1104
        %v1109 = vmul.f32 %v1086, %v1105
        %v1110 = vmul.f32 %v1088, %v1106
        %v1111 = vmul.f32 %v1090, %v1107
        %v1112 = vmul.f32 %v1092, %v1108
        %v1113 = vpack.c.bf16 %v1110, %v1109
        %v1114 = vpack.c.bf16 %v1112, %v1111
        %v1115 = vpack.c.bf16 %v1008, %v1008
        %v1117 = vsel %vm558, %v1113, 0
        %v1120 = vsel %vm558, %v1114, 0
        %v1123 = vsel %vm612, %v1115, 0
        %1125 = vmatprep.subr.bf16.mxu0 0
        %1126 = vmatpush1.bf16.msra.mxu0 %v1123
        %1127 = vmatprep.subr.bf16.mxu0 0
        %1128 = vmatpush1.bf16.msra.mxu0 0
        %1129 = vmatprep.subr.bf16.mxu0 0
        %1130 = vmatpush1.bf16.msra.mxu0 0
        %1131 = vmatprep.subr.bf16.mxu0 0
        %1132 = vmatpush1.bf16.msra.mxu0 0
        %1133 = vmatprep.subr.bf16.mxu0 0
        %1134 = vmatpush1.bf16.msra.mxu0 0
        %1135 = vmatprep.subr.bf16.mxu0 0
        %1136 = vmatpush1.bf16.msra.mxu0 0
        %1137 = vmatprep.subr.bf16.mxu0 0
        %1138 = vmatpush1.bf16.msra.mxu0 0
        %1139 = vmatprep.subr.bf16.mxu0 0
        %1140 = vmatpush1.bf16.msra.mxu0 0
        %1141 = vmatprep.subr.bf16.mxu0 0
        %1142 = vmatpush1.bf16.msra.mxu0 0
        %1143 = vmatprep.subr.bf16.mxu0 0
        %1144 = vmatpush1.bf16.msra.mxu0 0
        %1145 = vmatprep.subr.bf16.mxu0 0
        %1146 = vmatpush1.bf16.msra.mxu0 0
        %1147 = vmatprep.subr.bf16.mxu0 0
        %1148 = vmatpush1.bf16.msra.mxu0 0
        %1149 = vmatprep.subr.bf16.mxu0 0
        %1150 = vmatpush1.bf16.msra.mxu0 0
        %1151 = vmatprep.subr.bf16.mxu0 0
        %1152 = vmatpush1.bf16.msra.mxu0 0
        %1153 = vmatprep.subr.bf16.mxu0 0
        %1154 = vmatpush1.bf16.msra.mxu0 0
        %1155 = vmatprep.subr.bf16.mxu0 0
        %1156 = vmatpush1.bf16.msra.mxu0 0
        %1157 = vmatprep.mubr.bf16.mxu0 0
        %1158 = vmatmul.mubr.bf16.gmra.mrb[0].mxu0 %v1117
        %v1159 = vpop.f32.mrb[0].mxu0
        %v1160 = vadd.f32 0.0, %v1159
        %v1161 = vpop.f32.mrb[0].mxu0
        %v1162 = vpop.f32.mrb[0].mxu0
        %v1163 = vadd.f32 0.0, %v1162
        %v1164 = vpop.f32.mrb[0].mxu0
        %1165 = vmatprep.mubr.bf16.mxu0 0
        %1166 = vmatmul.mubr.bf16.gmra.mrb[0].mxu0 %v1120
        %v1167 = vpop.f32.mrb[0].mxu0
        %v1168 = vadd.f32 0.0, %v1167
        %v1169 = vpop.f32.mrb[0].mxu0
        %v1170 = vpop.f32.mrb[0].mxu0
        %v1171 = vadd.f32 0.0, %v1170
        %v1172 = vpop.f32.mrb[0].mxu0
        %1173 = vdwg.mxu0
        %v1174 = vmul.f32 %v1160, %v380
        %v1175 = vmul.f32 %v1163, %v381
        %v1176 = vmul.f32 %v1168, %v382
        %v1177 = vmul.f32 %v1171, %v383
        %v1178 = vadd.f32 %v1174, %v1175
        %v1179 = vadd.f32 %v1178, %v1176
        %v1180 = vadd.f32 %v1179, %v1177
        %v1181 = vpack.c.bf16 %v1180, %v1180
        %1182 = vmatprep.subr.bf16.mxu0 0
        %1183 = vmatpush1.bf16.msra.mxu0 %v705
        %1184 = vmatprep.subr.bf16.mxu0 0
        %1185 = vmatpush1.bf16.msra.mxu0 %v706
        %1186 = vmatprep.subr.bf16.mxu0 0
        %1187 = vmatpush1.bf16.msra.mxu0 %v707
        %1188 = vmatprep.subr.bf16.mxu0 0
        %1189 = vmatpush1.bf16.msra.mxu0 %v708
        %1190 = vmatprep.subr.bf16.mxu0 0
        %1191 = vmatpush1.bf16.msra.mxu0 %v709
        %1192 = vmatprep.subr.bf16.mxu0 0
        %1193 = vmatpush1.bf16.msra.mxu0 %v710
        %1194 = vmatprep.subr.bf16.mxu0 0
        %1195 = vmatpush1.bf16.msra.mxu0 %v711
        %1196 = vmatprep.subr.bf16.mxu0 0
        %1197 = vmatpush1.bf16.msra.mxu0 %v712
        %1198 = vmatprep.subr.bf16.mxu0 0
        %1199 = vmatpush1.bf16.msra.mxu0 0
        %1200 = vmatprep.subr.bf16.mxu0 0
        %1201 = vmatpush1.bf16.msra.mxu0 0
        %1202 = vmatprep.subr.bf16.mxu0 0
        %1203 = vmatpush1.bf16.msra.mxu0 0
        %1204 = vmatprep.subr.bf16.mxu0 0
        %1205 = vmatpush1.bf16.msra.mxu0 0
        %1206 = vmatprep.subr.bf16.mxu0 0
        %1207 = vmatpush1.bf16.msra.mxu0 0
        %1208 = vmatprep.subr.bf16.mxu0 0
        %1209 = vmatpush1.bf16.msra.mxu0 0
        %1210 = vmatprep.subr.bf16.mxu0 0
        %1211 = vmatpush1.bf16.msra.mxu0 0
        %1212 = vmatprep.subr.bf16.mxu0 0
        %1213 = vmatpush1.bf16.msra.mxu0 0
        %1214 = vmatprep.mubr.bf16.mxu0 0
        %1215 = vmatmul.mubr.bf16.gmra.mrb[0].mxu0 %v1181
        %v1216 = vpop.f32.mrb[0].mxu0
        %v1217 = vadd.f32 %v350, %v1216
        %v1218 = vpop.f32.mrb[0].mxu0
        %v1219 = vpop.f32.mrb[0].mxu0
        %v1220 = vpop.f32.mrb[0].mxu0
        %1221 = vdwg.mxu0
        %v1222 = vadd.f32 %v927, %v1217
        %v1223 = vsel %vm417, %v1222, 0.0
        %1224 = vadd.xlane.f32.xlu0 %v1223
        %v1225 = vpop.xlane.xlu0 %1224
        %v1226 = vmul.f32 %v1225, %v765
        %v1227 = vsub.f32 %v1222, %v1226
        %v1228 = vmul.f32 %v1227, %v1227
        %v1229 = vsel %vm417, %v1228, 0.0
        %1230 = vadd.xlane.f32.xlu0 %v1229
        %v1231 = vpop.xlane.xlu0 %1230
        %v1232 = vmul.f32 %v1231, %v765
        %v1233 = vadd.f32 %v1232, 1e-12
        %v1234 = vrsqrt.pop %v1233
        %v1235 = vmul.f32 %v1227, %v1234
        %v1236 = vmul.f32 %v1235, %v351
        %v1237 = vadd.f32 %v1236, %v352
        %v1238 = vpack.c.bf16 %v1237, %v1237
        %v1240 = vsel %vm417, %v1238, 0
        %1242 = vmatprep.subr.bf16.mxu0 0
        %1243 = vmatpush1.bf16.msra.mxu0 %v787
        %1244 = vmatprep.subr.bf16.mxu0 0
        %1245 = vmatpush1.bf16.msra.mxu0 %v788
        %1246 = vmatprep.subr.bf16.mxu0 0
        %1247 = vmatpush1.bf16.msra.mxu0 0
        %1248 = vmatprep.subr.bf16.mxu0 0
        %1249 = vmatpush1.bf16.msra.mxu0 0
        %1250 = vmatprep.subr.bf16.mxu0 0
        %1251 = vmatpush1.bf16.msra.mxu0 0
        %1252 = vmatprep.subr.bf16.mxu0 0
        %1253 = vmatpush1.bf16.msra.mxu0 0
        %1254 = vmatprep.subr.bf16.mxu0 0
        %1255 = vmatpush1.bf16.msra.mxu0 0
        %1256 = vmatprep.subr.bf16.mxu0 0
        %1257 = vmatpush1.bf16.msra.mxu0 0
        %1258 = vmatprep.subr.bf16.mxu0 0
        %1259 = vmatpush1.bf16.msra.mxu0 0
        %1260 = vmatprep.subr.bf16.mxu0 0
        %1261 = vmatpush1.bf16.msra.mxu0 0
        %1262 = vmatprep.subr.bf16.mxu0 0
        %1263 = vmatpush1.bf16.msra.mxu0 0
        %1264 = vmatprep.subr.bf16.mxu0 0
        %1265 = vmatpush1.bf16.msra.mxu0 0
        %1266 = vmatprep.subr.bf16.mxu0 0
        %1267 = vmatpush1.bf16.msra.mxu0 0
        %1268 = vmatprep.subr.bf16.mxu0 0
        %1269 = vmatpush1.bf16.msra.mxu0 0
        %1270 = vmatprep.subr.bf16.mxu0 0
        %1271 = vmatpush1.bf16.msra.mxu0 0
        %1272 = vmatprep.subr.bf16.mxu0 0
        %1273 = vmatpush1.bf16.msra.mxu0 0
        %1274 = vmatprep.mubr.bf16.mxu0 0
        %1275 = vmatmul.mubr.bf16.gmra.mrb[0].mxu0 %v1240
        %v1276 = vpop.f32.mrb[0].mxu0
        %v1277 = vadd.f32 %v353, %v1276
        %v1278 = vpop.f32.mrb[0].mxu0
        %v1279 = vpop.f32.mrb[0].mxu0
        %v1280 = vpop.f32.mrb[0].mxu0
        %1281 = vdwg.mxu0
        %v1282 = vmul.f32 %v1277, 0.5
        %v1283 = vmul.f32 %v1277, 0.044715
        %v1284 = vmul.f32 %v1283, %v1277
        %v1285 = vmul.f32 %v1284, %v1277
        %v1286 = vadd.f32 %v1277, %v1285
        %v1287 = vmul.f32 %v1286, 0.7978846
        %v1288 = vtanh.pop %v1287
        %v1289 = vadd.f32 %v1288, 1.0
        %v1290 = vmul.f32 %v1282, %v1289
        %v1291 = vpack.c.bf16 %v1290, %v1290
        %v1293 = vsel %vm868, %v1291, 0
        %1295 = vmatprep.subr.bf16.mxu0 0
        %1296 = vmatpush1.bf16.msra.mxu0 %v860
        %1297 = vmatprep.subr.bf16.mxu0 0
        %1298 = vmatpush1.bf16.msra.mxu0 %v861
        %1299 = vmatprep.subr.bf16.mxu0 0
        %1300 = vmatpush1.bf16.msra.mxu0 %v862
        %1301 = vmatprep.subr.bf16.mxu0 0
        %1302 = vmatpush1.bf16.msra.mxu0 %v863
        %1303 = vmatprep.subr.bf16.mxu0 0
        %1304 = vmatpush1.bf16.msra.mxu0 0
        %1305 = vmatprep.subr.bf16.mxu0 0
        %1306 = vmatpush1.bf16.msra.mxu0 0
        %1307 = vmatprep.subr.bf16.mxu0 0
        %1308 = vmatpush1.bf16.msra.mxu0 0
        %1309 = vmatprep.subr.bf16.mxu0 0
        %1310 = vmatpush1.bf16.msra.mxu0 0
        %1311 = vmatprep.subr.bf16.mxu0 0
        %1312 = vmatpush1.bf16.msra.mxu0 0
        %1313 = vmatprep.subr.bf16.mxu0 0
        %1314 = vmatpush1.bf16.msra.mxu0 0
        %1315 = vmatprep.subr.bf16.mxu0 0
        %1316 = vmatpush1.bf16.msra.mxu0 0
        %1317 = vmatprep.subr.bf16.mxu0 0
        %1318 = vmatpush1.bf16.msra.mxu0 0
        %1319 = vmatprep.subr.bf16.mxu0 0
        %1320 = vmatpush1.bf16.msra.mxu0 0
        %1321 = vmatprep.subr.bf16.mxu0 0
        %1322 = vmatpush1.bf16.msra.mxu0 0
        %1323 = vmatprep.subr.bf16.mxu0 0
        %1324 = vmatpush1.bf16.msra.mxu0 0
        %1325 = vmatprep.subr.bf16.mxu0 0
        %1326 = vmatpush1.bf16.msra.mxu0 0
        %1327 = vmatprep.mubr.bf16.mxu0 0
        %1328 = vmatmul.mubr.bf16.gmra.mrb[0].mxu0 %v1293
        %v1329 = vpop.f32.mrb[0].mxu0
        %v1330 = vadd.f32 %v354, %v1329
        %v1331 = vpop.f32.mrb[0].mxu0
        %v1332 = vpop.f32.mrb[0].mxu0
        %v1333 = vpop.f32.mrb[0].mxu0
        %1334 = vdwg.mxu0
        %v1335 = vadd.f32 %v1330, %v1237
        %v1336 = vsel %vm417, %v1335, 0.0
        %1337 = vadd.xlane.f32.xlu0 %v1336
        %v1338 = vpop.xlane.xlu0 %1337
        %v1339 = vmul.f32 %v1338, %v765
        %v1340 = vsub.f32 %v1335, %v1339
        %v1341 = vmul.f32 %v1340, %v1340
        %v1342 = vsel %vm417, %v1341, 0.0
        %1343 = vadd.xlane.f32.xlu0 %v1342
        %v1344 = vpop.xlane.xlu0 %1343
        %v1345 = vmul.f32 %v1344, %v765
        %v1346 = vadd.f32 %v1345, 1e-12
        %v1347 = vrsqrt.pop %v1346
        %v1348 = vmul.f32 %v1340, %v1347
        %v1349 = vmul.f32 %v1348, %v355
        %v1350 = vadd.f32 %v1349, %v356
        %v1351 = vld [vmem:[#allocation2 + $0x198] sm:$0xf]
        %v1352 = vld [vmem:[#allocation2 + $0x1a4] sm:$0xf]
        %v1353 = vld [vmem:[#allocation2 + $0x1b0] sm:$0xf]
        %v1354 = vld [vmem:[#allocation2 + $0x1bc] sm:$0xf]
        %v1355 = vpack.c.bf16 %v1350, %v1350
        %v1356 = vld [vmem:[%s3 + $0x1b] ss:$0 sm:$0xff]
        %v1361 = vunpack.c.l.b16 %v1351
        %v1362 = vunpack.c.l.b16 %v1352
        %v1363 = vunpack.c.l.b16 %v1353
        %v1364 = vunpack.c.l.b16 %v1354
        %v1365 = vpack.c.b16 %v1362, %v1361
        %v1366 = vpack.c.b16 %v1364, %v1363
        %v1370 = vsel %vm417, %v1355, 0
        %1372 = vmatprep.subr.bf16.mxu0 0
        %1373 = vmatpush1.bf16.msra.mxu0 %v1365
        %1374 = vmatprep.subr.bf16.mxu0 0
        %1375 = vmatpush1.bf16.msra.mxu0 %v1366
        %1376 = vmatprep.subr.bf16.mxu0 0
        %1377 = vmatpush1.bf16.msra.mxu0 0
        %1378 = vmatprep.subr.bf16.mxu0 0
        %1379 = vmatpush1.bf16.msra.mxu0 0
        %1380 = vmatprep.subr.bf16.mxu0 0
        %1381 = vmatpush1.bf16.msra.mxu0 0
        %1382 = vmatprep.subr.bf16.mxu0 0
        %1383 = vmatpush1.bf16.msra.mxu0 0
        %1384 = vmatprep.subr.bf16.mxu0 0
        %1385 = vmatpush1.bf16.msra.mxu0 0
        %1386 = vmatprep.subr.bf16.mxu0 0
        %1387 = vmatpush1.bf16.msra.mxu0 0
        %1388 = vmatprep.subr.bf16.mxu0 0
        %1389 = vmatpush1.bf16.msra.mxu0 0
        %1390 = vmatprep.subr.bf16.mxu0 0
        %1391 = vmatpush1.bf16.msra.mxu0 0
        %1392 = vmatprep.subr.bf16.mxu0 0
        %1393 = vmatpush1.bf16.msra.mxu0 0
        %1394 = vmatprep.subr.bf16.mxu0 0
        %1395 = vmatpush1.bf16.msra.mxu0 0
        %1396 = vmatprep.subr.bf16.mxu0 0
        %1397 = vmatpush1.bf16.msra.mxu0 0
        %1398 = vmatprep.subr.bf16.mxu0 0
        %1399 = vmatpush1.bf16.msra.mxu0 0
        %1400 = vmatprep.subr.bf16.mxu0 0
        %1401 = vmatpush1.bf16.msra.mxu0 0
        %1402 = vmatprep.subr.bf16.mxu0 0
        %1403 = vmatpush1.bf16.msra.mxu0 0
        %1404 = vmatprep.mubr.bf16.mxu0 0
        %1405 = vmatmul.mubr.bf16.gmra.mrb[0].mxu0 %v1370
        %v1406 = vpop.f32.mrb[0].mxu0
        %v1407 = vadd.f32 %v1356, %v1406
        %v1408 = vpop.f32.mrb[0].mxu0
        %v1409 = vpop.f32.mrb[0].mxu0
        %v1410 = vpop.f32.mrb[0].mxu0
        %1411 = vdwg.mxu0
        %v1412 = vmul.f32 %v1407, 0.5
        %v1413 = vmul.f32 %v1407, 0.044715
        %v1414 = vmul.f32 %v1413, %v1407
        %v1415 = vmul.f32 %v1414, %v1407
        %v1416 = vadd.f32 %v1407, %v1415
        %v1417 = vmul.f32 %v1416, 0.7978846
        %v1418 = vtanh.pop %v1417
        %v1419 = vadd.f32 %v1418, 1.0
        %v1420 = vmul.f32 %v1412, %v1419
        %v1421 = vld [vmem:[%s3 + $0x1c] ss:$0 sm:$0xff]
        %v1422 = vld [vmem:[%s3 + $0x1d] ss:$0 sm:$0xff]
        %v1423 = vsel %vm226, %v1420, 0.0
        %1424 = vadd.xlane.f32.xlu0 %v1423
        %v1425 = vpop.xlane.xlu0 %1424
        %v1426 = vmul.f32 %v1425, %v230
        %v1427 = vsub.f32 %v1420, %v1426
        %v1428 = vmul.f32 %v1427, %v1427
        %v1429 = vsel %vm226, %v1428, 0.0
        %1430 = vadd.xlane.f32.xlu0 %v1429
        %v1431 = vpop.xlane.xlu0 %1430
        %v1432 = vmul.f32 %v1431, %v230
        %v1433 = vadd.f32 %v1432, 1e-12
        %v1434 = vrsqrt.pop %v1433
        %v1435 = vmul.f32 %v1427, %v1434
        %v1436 = vmul.f32 %v1435, %v1421
        %v1437 = vadd.f32 %v1436, %v1422
        %v1438 = vld [vmem:[#allocation2 + $0x1c8] sm:$0xf]
        %v1439 = vld [vmem:[#allocation2 + $0x1d4] sm:$0xf]
        %v1440 = vpack.c.bf16 %v1437, %v1437
        %v1441 = vld [vmem:[%s3 + $0x1e] ss:$0 sm:$0xff]
        %v1444 = vunpack.c.l.b16 %v1438
        %v1445 = vunpack.c.l.b16 %v1439
        %v1446 = vpack.c.b16 %v1445, %v1444
        %v1449 = vsel %vm226, %v1440, 0
        %1451 = vmatprep.subr.bf16.mxu0 0
        %1452 = vmatpush1.bf16.msra.mxu0 %v1446
        %1453 = vmatprep.subr.bf16.mxu0 0
        %1454 = vmatpush1.bf16.msra.mxu0 0
        %1455 = vmatprep.subr.bf16.mxu0 0
        %1456 = vmatpush1.bf16.msra.mxu0 0
        %1457 = vmatprep.subr.bf16.mxu0 0
        %1458 = vmatpush1.bf16.msra.mxu0 0
        %1459 = vmatprep.subr.bf16.mxu0 0
        %1460 = vmatpush1.bf16.msra.mxu0 0
        %1461 = vmatprep.subr.bf16.mxu0 0
        %1462 = vmatpush1.bf16.msra.mxu0 0
        %1463 = vmatprep.subr.bf16.mxu0 0
        %1464 = vmatpush1.bf16.msra.mxu0 0
        %1465 = vmatprep.subr.bf16.mxu0 0
        %1466 = vmatpush1.bf16.msra.mxu0 0
        %1467 = vmatprep.subr.bf16.mxu0 0
        %1468 = vmatpush1.bf16.msra.mxu0 0
        %1469 = vmatprep.subr.bf16.mxu0 0
        %1470 = vmatpush1.bf16.msra.mxu0 0
        %1471 = vmatprep.subr.bf16.mxu0 0
        %1472 = vmatpush1.bf16.msra.mxu0 0
        %1473 = vmatprep.subr.bf16.mxu0 0
        %1474 = vmatpush1.bf16.msra.mxu0 0
        %1475 = vmatprep.subr.bf16.mxu0 0
        %1476 = vmatpush1.bf16.msra.mxu0 0
        %1477 = vmatprep.subr.bf16.mxu0 0
        %1478 = vmatpush1.bf16.msra.mxu0 0
        %1479 = vmatprep.subr.bf16.mxu0 0
        %1480 = vmatpush1.bf16.msra.mxu0 0
        %1481 = vmatprep.subr.bf16.mxu0 0
        %1482 = vmatpush1.bf16.msra.mxu0 0
        %1483 = vmatprep.mubr.bf16.mxu0 0
        %1484 = vmatmul.mubr.bf16.gmra.mrb[0].mxu0 %v1449
        %v1485 = vpop.f32.mrb[0].mxu0
        %v1486 = vadd.f32 %v1441, %v1485
        %v1487 = vpop.f32.mrb[0].mxu0
        %v1488 = vpop.f32.mrb[0].mxu0
        %v1489 = vpop.f32.mrb[0].mxu0
        %1490 = vdwg.mxu0
        %1491 = vst [vmem:[%s221] sm:$0xff] %v1486
        %p1492 = scmp.lt.s32.totalorder %s16, 1
        %s1493 = scalar_select %p1492, %s16, 1
        %s1494 = smul.addr %s1493, 8
        %s1495 = scalar_lea.vmem %s4, %s1494
        // Predicated region
        $region41: #{albert_maskfill_forward.1} parent=35 // pred_check
          %p1496 = pneg %p128
        $region42: #{albert_maskfill_forward.1} parent=35 // pred_check_branch
          %1498 = sbr.rel (%p1496) target = $region44
        $region43: #{albert_maskfill_forward.1} parent=35 // pred_region
          _
        $region44: #{albert_maskfill_forward.1} parent=35 // pred_fallthru
          _
      $region36: #{albert_maskfill_forward.1} parent=5 // pred_fallthru
        _
      %p1499 = scmp.le.s32.totalorder 2, %s11
      // Predicated region
      $region45: #{albert_maskfill_forward.1} parent=5 // pred_check
        %p1500 = pneg %p1499
      $region46: #{albert_maskfill_forward.1} parent=5 // pred_check_branch
        %1502 = sbr.rel (%p1500) target = $region48
      $region47: #{albert_maskfill_forward.1} parent=5 // pred_region
        %s1503 = ssub.s32 %s11, 2
        // Predicated region
        $region49: #{albert_maskfill_forward.1} parent=47 // pred_check
          %p1504 = pneg %p134
        $region50: #{albert_maskfill_forward.1} parent=47 // pred_check_branch
          %1506 = sbr.rel (%p1504) target = $region52
        $region51: #{albert_maskfill_forward.1} parent=47 // pred_region
          %p1507 = scmp.lt.s32.totalorder %s17, 1
          %s1508 = scalar_select %p1507, %s17, 1
          %s1509 = smul.addr %s1508, 8
          %s1510 = scalar_lea.vmem %s4, %s1509
        $region52: #{albert_maskfill_forward.1} parent=47 // pred_fallthru
          _
      $region48: #{albert_maskfill_forward.1} parent=5 // pred_fallthru
        _
    $region6: #{albert_maskfill_forward.1} parent=1 // loop_footer
      %s15 = sadd.s32 1, %s11
    $region7: #{albert_maskfill_forward.1} parent=1 // loop_footer_branch
      %10 = sbr.rel target = $region3
    $region8: #{albert_maskfill_forward.1} parent=1 // loop_exit
      _
    %1511 = vsyncpa [#allocation3], 1
    %s1512 = scalar_lea.sflag [#allocation3], 1
    %1513 = vsyncpa %s1512, 1

</llo_original>
